<compile_context>
chip_gen: v5e
topology: v5e:2x2
jax: 0.10.0
libtpu: 0.0.40
codegen_flags: <defaults>
</compile_context>

<pallas_src>
import functools

import jax
import jax.numpy as jnp
from jax import lax
from jax.experimental import pallas as pl
from jax.experimental.pallas import tpu as pltpu


# -----------------------------------------------------------------------------
# Small helpers
# -----------------------------------------------------------------------------
def _pick_tile(dim, prefs, align):
    """Largest preferred tile that divides `dim` and is `align`-aligned; falls
    back to the full dimension (always a legal Pallas block size)."""
    for p in prefs:
        if p <= dim and dim % p == 0 and p % align == 0:
            return p
    return dim


def _vmem_limit(cap_bytes):
    """Per-core VMEM budget: ~85% of hardware capacity, capped at cap_bytes.
    (v5e/v6e: 128 MiB physical -> ~cap; v7x: 64 MiB/TC -> ~54 MB)."""
    default = 64 * 1024 * 1024
    try:
        hw = getattr(pltpu.get_tpu_info(), "vmem_capacity_bytes", default) or default
    except Exception:  # no TPU info available at trace time
        hw = default
    return int(min(cap_bytes, 0.85 * hw))


def _spec(shape, index_map, buffers=None):
    """BlockSpec with an optional explicit pipeline buffer count.
    buffers=1 disables double-buffering for operands whose index_map is
    constant along the inner grid axis (resident slabs) — this halves their
    VMEM footprint (matters for v7x's 64 MiB/TC).  Falls back to the default
    spec if this JAX build lacks the pipeline_mode API."""
    if buffers is not None and hasattr(pl, "Buffered"):
        try:
            return pl.BlockSpec(shape, index_map, pipeline_mode=pl.Buffered(buffers))
        except (TypeError, ValueError):
            pass
    return pl.BlockSpec(shape, index_map)


# -----------------------------------------------------------------------------
# Kernel 1: fused Key/Value 3x3 conv (9-tap accumulated matmuls, no im2col)
# -----------------------------------------------------------------------------
def _conv3x3_kv_kernel(xf_ref, w_ref, b_ref, o_ref, *, Wp):
    # xf: (L, Cin)  bf16  flat spatial-major zero-padded image,
    #                     L = Hp*Wp + 2*(Wp+1) so every tap is a contiguous
    #                     sublane window at offset ky*Wp + kx.
    # w : (9, Cout, Cin) bf16, tap-major (t = ky*3 + kx)
    # b : (Cout, 1) f32
    # o : (Cout, N)  f32  output over the padded grid (border rows/cols are
    #                     junk and sliced away on the host)
    N = o_ref.shape[1]
    acc = jnp.zeros(o_ref.shape, jnp.float32)
    for ky in range(3):
        for kx in range(3):
            t = ky * 3 + kx
            off = ky * Wp + kx
            slab = xf_ref[off:off + N, :]                     # (N, Cin) bf16
            # out[o, q] += sum_c w[t, o, c] * slab[q, c]   (NT matmul)
            acc = acc + lax.dot_general(
                w_ref[t], slab, (((1,), (1,)), ((), ())),
                preferred_element_type=jnp.float32)
    o_ref[...] = acc + b_ref[...]


def conv3x3_kv(x, Wk, bk, Wv, bv):
    """Fused Key/Value 3x3 convs (stride 1, padding 1) of the KeyValue head.
    x: (1, Cin, H, W) NCHW.  Returns (keydim+valdim, H*W), channel-major, so
    key rows feed the memory kernel and value rows feed the concat directly."""
    _, Cin, H, W = x.shape
    Hp, Wp = H + 2, W + 2
    N = Hp * Wp
    Cout = Wk.shape[0] + Wv.shape[0]

    # Spatial-major, zero-padded flat slab with a (Wp+1)-row halo on each end:
    # tap (ky,kx) becomes the contiguous row window [ky*Wp+kx, ky*Wp+kx+N).
    # The image is read from HBM exactly once (vs 9x for an im2col), in bf16.
    xsp = jnp.transpose(x[0], (1, 2, 0))                       # (H, W, Cin)
    xsp = jnp.pad(xsp, ((1, 1), (1, 1), (0, 0))).reshape(N, Cin)
    xf = jnp.pad(xsp, ((Wp + 1, Wp + 1), (0, 0))).astype(jnp.bfloat16)  # (L, Cin)

    w = jnp.concatenate([Wk, Wv], axis=0)                      # (Cout, Cin, 3, 3)
    w_taps = jnp.transpose(w, (2, 3, 0, 1)).reshape(9, Cout, Cin).astype(jnp.bfloat16)
    bias = jnp.concatenate([bk, bv]).astype(jnp.float32).reshape(Cout, 1)

    out_pad = pl.pallas_call(
        functools.partial(_conv3x3_kv_kernel, Wp=Wp),
        out_shape=jax.ShapeDtypeStruct((Cout, N), jnp.float32),
        grid=(1,),
        in_specs=[pl.BlockSpec((xf.shape[0], Cin), lambda i: (0, 0)),
                  pl.BlockSpec((9, Cout, Cin), lambda i: (0, 0, 0)),
                  pl.BlockSpec((Cout, 1), lambda i: (0, 0))],
        out_specs=pl.BlockSpec((Cout, N), lambda i: (0, 0)),
        compiler_params=pltpu.CompilerParams(
            dimension_semantics=("arbitrary",),
            vmem_limit_bytes=_vmem_limit(64 * 1024 * 1024)),
    )(xf, w_taps, bias)
    # TODO(synk): for very large feature maps add an HW-tiled grid axis instead
    # of a single full-image block.
    out = out_pad.reshape(Cout, Hp, Wp)[:, 1:H + 1, 1:W + 1]
    return out.reshape(Cout, H * W)                            # (keydim+valdim, HW)


# -----------------------------------------------------------------------------
# Kernel 2: Memory.forward  (affinity + softmax_w_g_top + readout), HW-tiled
# -----------------------------------------------------------------------------
def _memory_kernel(mi_ref, qi_ref, mo_ref, mem_ref, *p_refs, top_k, n_iter):
    # Per (object, query-tile) block:
    #   mi (1, De, THW) bf16   mem-key bank (resident across query tiles)
    #   qi (1, th, De)  bf16   query keys for this tile (transposed, small)
    #   mo (1, Do, THW) bf16   mem-value bank (resident)
    #   mem (1, Do, th) f32    readout
    #   p  (1, th, THW) f32    [optional] softmax_w_g_top weights (viz only)
    q = qi_ref[0]                                              # (th, De)
    mi = mi_ref[0]                                             # (De, THW)
    # Affinity s[i, t] = sum_d q[i, d] * mi[d, t]  — plain NN matmul; the key
    # bank keeps its native (De, THW) layout (THW on lanes, no host transpose).
    s = jnp.dot(q, mi, preferred_element_type=jnp.float32)     # (th, THW) f32

    thw = s.shape[1]
    row_max = jnp.max(s, axis=1, keepdims=True)                # (th, 1)

    # softmax_w_g_top: per query row keep the top-k affinities and softmax them
    # relative to the row max.  The k-th value is found with a count-based
    # binary search on the threshold: each iteration is one compare + one
    # per-row count, and the iteration count is independent of k (vs k-1
    # full-slab passes of a running-threshold refinement).  Exact ties at the
    # threshold keep more than k entries (differs from torch.topk only for
    # exactly equal affinities).
    if top_k >= thw:
        thresh = jnp.min(s, axis=1, keepdims=True)             # keep everything
    elif top_k <= 1:
        thresh = row_max
    else:
        row_min = jnp.min(s, axis=1, keepdims=True)
        kf = jnp.float32(top_k)

        def step(_, carry):
            lo, hi = carry
            mid = 0.5 * (lo + hi)
            cnt = jnp.sum((s >= mid).astype(jnp.float32), axis=1, keepdims=True)
            keep = cnt >= kf
            return jnp.where(keep, mid, lo), jnp.where(keep, hi, mid)

        lo, _ = lax.fori_loop(0, n_iter, step, (row_min, row_max))
        thresh = lo

    # exp / compares stay f32 (v5e has no bf16 VPU/EUP); recip goes to the EUP.
    e = jnp.where(s >= thresh, jnp.exp(s - row_max), 0.0)      # (th, THW) f32
    inv = pl.reciprocal(jnp.sum(e, axis=1, keepdims=True), approx=True)
    e = e * inv                                                # normalized weights

    # Readout mem[o, i] = sum_t mo[o, t] * e[i, t]  (transposed-RHS bf16 matmul)
    mem_ref[0] = lax.dot_general(mo_ref[0], e.astype(jnp.bfloat16),
                                 (((1,), (1,)), ((), ())),
                                 preferred_element_type=jnp.float32)

    if p_refs:
        p_refs[0][0] = e


def memory_read(m_in, m_out, q_in, q_out, top_k, *, return_p=False, n_iter=30):
    """Mirrors Memory.forward (top_k path).
    m_in:(B,De,T,H,W)  m_out:(B,Do,T,H,W)  q_in:(1|B,De,HW)  q_out:(1|B,Dv,HW)
    (a leading dim of 1 means the query is shared by all objects).
    Returns (mem_out:(B,Do+Dv,H,W), p:(B,THW,HW) or None)."""
    assert top_k is not None  # TODO(synk): top_k=None double-softmax path not implemented.
    B, De, T, H, W = m_in.shape
    Do = m_out.shape[1]
    Dv = q_out.shape[1]
    THW, HW = T * H * W, H * W
    assert q_in.shape[-1] == HW

    # MXU operands in bf16 (f32 accumulation inside the kernel); the key/value
    # banks keep their native (B, D, THW) layout — no host transpose.
    mi = m_in.reshape(B, De, THW).astype(jnp.bfloat16)
    mo = m_out.reshape(B, Do, THW).astype(jnp.bfloat16)

    # Query keys transposed to (qB, HW, De) (tiny) and padded so every query
    # tile is 128-aligned; padded rows are zero and sliced away below.
    HWp = ((HW + 127) // 128) * 128
    qiT = jnp.swapaxes(q_in, 1, 2).astype(jnp.bfloat16)        # (qB, HW, De)
    if HWp != HW:
        qiT = jnp.pad(qiT, ((0, 0), (0, HWp - HW), (0, 0)))
    qB = qiT.shape[0]
    q_map = (lambda b, h: (b, h, 0)) if qB == B else (lambda b, h: (0, h, 0))

    th = _pick_tile(HWp, (512, 256, 128), 128)
    grid = (B, HWp // th)

    # mi / mo index maps ignore the query-tile axis: they stay resident in VMEM
    # across the inner HW loop and are single-buffered (double-buffering a
    # constant block is pure VMEM waste).
    in_specs = [_spec((1, De, THW), lambda b, h: (b, 0, 0), buffers=1),
                pl.BlockSpec((1, th, De), q_map),
                _spec((1, Do, THW), lambda b, h: (b, 0, 0), buffers=1)]
    mem_spec = pl.BlockSpec((1, Do, th), lambda b, h: (b, 0, h))
    mem_shape = jax.ShapeDtypeStruct((B, Do, HWp), jnp.float32)
    kernel = functools.partial(_memory_kernel, top_k=top_k, n_iter=n_iter)
    cparams = pltpu.CompilerParams(
        # b leads and is the only parallel axis, so megacore sharding splits
        # objects across cores and each core only holds its own mi/mo slabs.
        dimension_semantics=("parallel", "arbitrary"),
        vmem_limit_bytes=_vmem_limit(100 * 1024 * 1024))
    # TODO(synk): for very long memory banks (THW >> 16k) add a streamed THW
    # grid axis (two-pass threshold + readout, or online softmax) instead of
    # full mi/mo residency.

    if return_p:
        mem, p = pl.pallas_call(
            kernel,
            out_shape=(mem_shape,
                       jax.ShapeDtypeStruct((B, HWp, THW), jnp.float32)),
            grid=grid,
            in_specs=in_specs,
            out_specs=(mem_spec,
                       pl.BlockSpec((1, th, THW), lambda b, h: (b, h, 0))),
            compiler_params=cparams,
        )(mi, qiT, mo)
        # Visualization-only output: restore the torch (B, THW, HW) layout.
        p = jnp.swapaxes(p[:, :HW, :], 1, 2)
    else:
        mem = pl.pallas_call(
            kernel, out_shape=mem_shape, grid=grid,
            in_specs=in_specs, out_specs=mem_spec,
            compiler_params=cparams,
        )(mi, qiT, mo)
        p = None

    mem = mem[:, :, :HW]
    # q_out is broadcast to the object axis only here (never materialized as a
    # kernel input).
    q_out_b = jnp.broadcast_to(q_out.astype(jnp.float32), (B, Dv, HW))
    mem_out = jnp.concatenate([mem, q_out_b], axis=1)          # (B, Do+Dv, HW)
    return mem_out.reshape(B, -1, H, W), p


# -----------------------------------------------------------------------------
# STM "segment" memory stage wrapper  (KV_Q_r4 -> expand -> Memory)
# -----------------------------------------------------------------------------
def init_keyvalue_params(key, indim, keydim, valdim):
    k1, k2, k3, k4 = jax.random.split(key, 4)
    scale = 1.0 / jnp.sqrt(jnp.float32(indim * 9))
    Wk = jax.random.uniform(k1, (keydim, indim, 3, 3), jnp.float32, -scale, scale)
    bk = jax.random.uniform(k2, (keydim,), jnp.float32, -scale, scale)
    Wv = jax.random.uniform(k3, (valdim, indim, 3, 3), jnp.float32, -scale, scale)
    bv = jax.random.uniform(k4, (valdim,), jnp.float32, -scale, scale)
    return dict(Wk=Wk, bk=bk, Wv=Wv, bv=bv)


def stm_memory_stage(r4, mem_keys, mem_vals, params, num_objects, top_k,
                     return_p=False):
    # k4, v4 = self.KV_Q_r4(r4)   (fused into one conv kernel call)
    _, Cin, H, W = r4.shape
    keydim = params['bk'].shape[0]
    kv = conv3x3_kv(r4, params['Wk'], params['bk'], params['Wv'], params['bv'])
    # k4e / v4e object expansion is NOT materialized: the memory kernel's query
    # index_map ignores the object axis; q_out is broadcast only at the concat.
    k4 = kv[:keydim][None]                                     # (1, keydim, HW)
    v4 = kv[keydim:][None]                                     # (1, valdim, HW)
    # m4, viz = self.Memory(keys[0,1:no+1], values[0,1:no+1], k4e, v4e)
    return memory_read(mem_keys, mem_vals, k4, v4, top_k, return_p=return_p)


# -----------------------------------------------------------------------------
# Pure-JAX references (correctness checks, bf16-quantized operands like the
# kernels, f32 accumulation)
# -----------------------------------------------------------------------------
def _q16(x):
    return x.astype(jnp.bfloat16).astype(jnp.float32)


def _conv_reference(r4, Wk, bk, Wv, bv):
    x = _q16(r4)

    def conv(w, b):
        y = lax.conv_general_dilated(
            x, _q16(w), (1, 1), 'SAME',
            dimension_numbers=('NCHW', 'OIHW', 'NCHW'))
        return y + b.reshape(1, -1, 1, 1)

    return conv(Wk, bk), conv(Wv, bv)


def _memory_reference(m_in, m_out, q_in, q_out, top_k):
    B, De, T, H, W = m_in.shape
    Do = m_out.shape[1]
    Dv = q_out.shape[1]
    THW, HW = T * H * W, H * W
    mi = _q16(m_in.reshape(B, De, THW))
    qi = _q16(jnp.broadcast_to(q_in, (B, De, HW)))
    p = jnp.einsum('bdt,bdh->bth', mi, qi)
    pt = jnp.swapaxes(p, 1, 2)                                 # (B, HW, THW)
    vals, _ = lax.top_k(pt, top_k)                             # descending
    e = jnp.where(pt >= vals[..., -1:], jnp.exp(pt - vals[..., :1]), 0.0)
    w = e / jnp.sum(e, axis=-1, keepdims=True)
    p_sm = jnp.swapaxes(w, 1, 2)                               # (B, THW, HW)
    mo = _q16(m_out.reshape(B, Do, THW))
    mem = jnp.einsum('bot,bth->boh', mo, _q16(p_sm))
    q_out_b = jnp.broadcast_to(q_out, (B, Dv, HW))
    mem_out = jnp.concatenate([mem, q_out_b], axis=1).reshape(B, -1, H, W)
    return mem_out, p_sm


# -----------------------------------------------------------------------------
if __name__ == "__main__":
    key = jax.random.PRNGKey(0)
    num_objects = 2
    Cin, keydim, valdim = 128, 16, 32     # scaled-down 1024 / 128 / 512
    T, H, W = 2, 16, 16
    top_k = 8                             # scaled-down top_k=50

    kp, k1, k2, k3 = jax.random.split(key, 4)
    params = init_keyvalue_params(kp, Cin, keydim, valdim)
    r4 = jax.random.normal(k1, (1, Cin, H, W), jnp.float32)
    mem_keys = jax.random.normal(k2, (num_objects, keydim, T, H, W), jnp.float32)
    mem_vals = jax.random.normal(k3, (num_objects, valdim, T, H, W), jnp.float32)

    m4, p = stm_memory_stage(r4, mem_keys, mem_vals, params, num_objects, top_k,
                             return_p=True)
    jax.block_until_ready((m4, p))

    # Production path: skip the (B, THW, HW) visualization output entirely.
    m4_fast, _ = stm_memory_stage(r4, mem_keys, mem_vals, params, num_objects,
                                  top_k, return_p=False)
    jax.block_until_ready(m4_fast)

    HW = H * W
    assert m4.shape == (num_objects, 2 * valdim, H, W)
    assert p.shape == (num_objects, T * HW, HW)

    # Conv check: 9-tap Pallas conv vs lax.conv (both on bf16-quantized operands).
    kv = conv3x3_kv(r4, params['Wk'], params['bk'], params['Wv'], params['bv'])
    k4_ref, v4_ref = _conv_reference(r4, params['Wk'], params['bk'],
                                     params['Wv'], params['bv'])
    kv_ref = jnp.concatenate([k4_ref, v4_ref], axis=1).reshape(keydim + valdim, HW)
    assert jnp.allclose(kv, kv_ref, atol=2e-2, rtol=2e-2), "KV conv mismatch"

    # Memory check: reference driven by the kernel's own k4/v4 so it isolates
    # the affinity / top-k / readout kernel.
    k4 = kv[:keydim][None]
    v4 = kv[keydim:][None]
    m4_ref, p_ref = _memory_reference(mem_keys, mem_vals, k4, v4, top_k)
    assert jnp.allclose(p, p_ref, atol=5e-3, rtol=5e-3), "affinity mismatch"
    assert jnp.allclose(m4, m4_ref, atol=2e-2, rtol=2e-2), "readout mismatch"
    assert jnp.allclose(m4_fast, m4, atol=1e-4, rtol=1e-4), "fast-path mismatch"

    print("KERNEL_OK")
</pallas_src>

<mosaic_0001>
module attributes {stable_mosaic.version = 11 : i64} {
  func.func @_conv3x3_kv_kernel(%arg0: i32, %arg1: memref<362x128xbf16, #tpu.memory_space<vmem>>, %arg2: memref<9x48x128xbf16, #tpu.memory_space<vmem>>, %arg3: memref<48x1xf32, #tpu.memory_space<vmem>>, %arg4: memref<48x324xf32, #tpu.memory_space<vmem>>) attributes {dimension_semantics = [#tpu.dimension_semantics<arbitrary>], iteration_bounds = array<i64: 1>, scalar_prefetch = 0 : i64, scratch_operands = 0 : i64, tpu.core_type = #tpu.core_type<tc>, window_params = [{pipeline_mode = #tpu.pipeline_mode<synchronous>, transform_indices = @transform_0, window_bounds = array<i64: 362, 128>}, {pipeline_mode = #tpu.pipeline_mode<synchronous>, transform_indices = @transform_1, window_bounds = array<i64: 9, 48, 128>}, {pipeline_mode = #tpu.pipeline_mode<synchronous>, transform_indices = @transform_2, window_bounds = array<i64: 48, 1>}, {pipeline_mode = #tpu.pipeline_mode<synchronous>, transform_indices = @transform_3, window_bounds = array<i64: 48, 324>}]} {
    %cst = arith.constant 0.000000e+00 : f32
    %0 = vector.broadcast %cst : f32 to vector<48x324xf32>
    %c0 = arith.constant 0 : index
    %c0_0 = arith.constant 0 : index
    %1 = vector.load %arg1[%c0, %c0_0] : memref<362x128xbf16, #tpu.memory_space<vmem>>, vector<324x128xbf16>
    %c0_1 = arith.constant 0 : index
    %c0_2 = arith.constant 0 : index
    %c0_3 = arith.constant 0 : index
    %2 = vector.load %arg2[%c0_1, %c0_2, %c0_3] : memref<9x48x128xbf16, #tpu.memory_space<vmem>>, vector<1x48x128xbf16>
    %3 = vector.shape_cast %2 : vector<1x48x128xbf16> to vector<48x128xbf16>
    %cst_4 = arith.constant dense<0.000000e+00> : vector<48x324xf32>
    %4 = tpu.matmul %3, %1, %cst_4 {dimension_numbers = #tpu.dot_dimension_numbers<[1], [1], [0], [0], [0, 0, 1, 0], [], []>} : vector<48x128xbf16>, vector<324x128xbf16>, vector<48x324xf32> -> vector<48x324xf32>
    %5 = arith.addf %0, %4 : vector<48x324xf32>
    %c1 = arith.constant 1 : index
    %c0_5 = arith.constant 0 : index
    %6 = vector.load %arg1[%c1, %c0_5] : memref<362x128xbf16, #tpu.memory_space<vmem>>, vector<324x128xbf16>
    %c1_6 = arith.constant 1 : index
    %c0_7 = arith.constant 0 : index
    %c0_8 = arith.constant 0 : index
    %7 = vector.load %arg2[%c1_6, %c0_7, %c0_8] : memref<9x48x128xbf16, #tpu.memory_space<vmem>>, vector<1x48x128xbf16>
    %8 = vector.shape_cast %7 : vector<1x48x128xbf16> to vector<48x128xbf16>
    %cst_9 = arith.constant dense<0.000000e+00> : vector<48x324xf32>
    %9 = tpu.matmul %8, %6, %cst_9 {dimension_numbers = #tpu.dot_dimension_numbers<[1], [1], [0], [0], [0, 0, 1, 0], [], []>} : vector<48x128xbf16>, vector<324x128xbf16>, vector<48x324xf32> -> vector<48x324xf32>
    %10 = arith.addf %5, %9 : vector<48x324xf32>
    %c2 = arith.constant 2 : index
    %c0_10 = arith.constant 0 : index
    %11 = vector.load %arg1[%c2, %c0_10] : memref<362x128xbf16, #tpu.memory_space<vmem>>, vector<324x128xbf16>
    %c2_11 = arith.constant 2 : index
    %c0_12 = arith.constant 0 : index
    %c0_13 = arith.constant 0 : index
    %12 = vector.load %arg2[%c2_11, %c0_12, %c0_13] : memref<9x48x128xbf16, #tpu.memory_space<vmem>>, vector<1x48x128xbf16>
    %13 = vector.shape_cast %12 : vector<1x48x128xbf16> to vector<48x128xbf16>
    %cst_14 = arith.constant dense<0.000000e+00> : vector<48x324xf32>
    %14 = tpu.matmul %13, %11, %cst_14 {dimension_numbers = #tpu.dot_dimension_numbers<[1], [1], [0], [0], [0, 0, 1, 0], [], []>} : vector<48x128xbf16>, vector<324x128xbf16>, vector<48x324xf32> -> vector<48x324xf32>
    %15 = arith.addf %10, %14 : vector<48x324xf32>
    %c18 = arith.constant 18 : index
    %c0_15 = arith.constant 0 : index
    %16 = vector.load %arg1[%c18, %c0_15] : memref<362x128xbf16, #tpu.memory_space<vmem>>, vector<324x128xbf16>
    %c3 = arith.constant 3 : index
    %c0_16 = arith.constant 0 : index
    %c0_17 = arith.constant 0 : index
    %17 = vector.load %arg2[%c3, %c0_16, %c0_17] : memref<9x48x128xbf16, #tpu.memory_space<vmem>>, vector<1x48x128xbf16>
    %18 = vector.shape_cast %17 : vector<1x48x128xbf16> to vector<48x128xbf16>
    %cst_18 = arith.constant dense<0.000000e+00> : vector<48x324xf32>
    %19 = tpu.matmul %18, %16, %cst_18 {dimension_numbers = #tpu.dot_dimension_numbers<[1], [1], [0], [0], [0, 0, 1, 0], [], []>} : vector<48x128xbf16>, vector<324x128xbf16>, vector<48x324xf32> -> vector<48x324xf32>
    %20 = arith.addf %15, %19 : vector<48x324xf32>
    %c19 = arith.constant 19 : index
    %c0_19 = arith.constant 0 : index
    %21 = vector.load %arg1[%c19, %c0_19] : memref<362x128xbf16, #tpu.memory_space<vmem>>, vector<324x128xbf16>
    %c4 = arith.constant 4 : index
    %c0_20 = arith.constant 0 : index
    %c0_21 = arith.constant 0 : index
    %22 = vector.load %arg2[%c4, %c0_20, %c0_21] : memref<9x48x128xbf16, #tpu.memory_space<vmem>>, vector<1x48x128xbf16>
    %23 = vector.shape_cast %22 : vector<1x48x128xbf16> to vector<48x128xbf16>
    %cst_22 = arith.constant dense<0.000000e+00> : vector<48x324xf32>
    %24 = tpu.matmul %23, %21, %cst_22 {dimension_numbers = #tpu.dot_dimension_numbers<[1], [1], [0], [0], [0, 0, 1, 0], [], []>} : vector<48x128xbf16>, vector<324x128xbf16>, vector<48x324xf32> -> vector<48x324xf32>
    %25 = arith.addf %20, %24 : vector<48x324xf32>
    %c20 = arith.constant 20 : index
    %c0_23 = arith.constant 0 : index
    %26 = vector.load %arg1[%c20, %c0_23] : memref<362x128xbf16, #tpu.memory_space<vmem>>, vector<324x128xbf16>
    %c5 = arith.constant 5 : index
    %c0_24 = arith.constant 0 : index
    %c0_25 = arith.constant 0 : index
    %27 = vector.load %arg2[%c5, %c0_24, %c0_25] : memref<9x48x128xbf16, #tpu.memory_space<vmem>>, vector<1x48x128xbf16>
    %28 = vector.shape_cast %27 : vector<1x48x128xbf16> to vector<48x128xbf16>
    %cst_26 = arith.constant dense<0.000000e+00> : vector<48x324xf32>
    %29 = tpu.matmul %28, %26, %cst_26 {dimension_numbers = #tpu.dot_dimension_numbers<[1], [1], [0], [0], [0, 0, 1, 0], [], []>} : vector<48x128xbf16>, vector<324x128xbf16>, vector<48x324xf32> -> vector<48x324xf32>
    %30 = arith.addf %25, %29 : vector<48x324xf32>
    %c36 = arith.constant 36 : index
    %c0_27 = arith.constant 0 : index
    %31 = vector.load %arg1[%c36, %c0_27] : memref<362x128xbf16, #tpu.memory_space<vmem>>, vector<324x128xbf16>
    %c6 = arith.constant 6 : index
    %c0_28 = arith.constant 0 : index
    %c0_29 = arith.constant 0 : index
    %32 = vector.load %arg2[%c6, %c0_28, %c0_29] : memref<9x48x128xbf16, #tpu.memory_space<vmem>>, vector<1x48x128xbf16>
    %33 = vector.shape_cast %32 : vector<1x48x128xbf16> to vector<48x128xbf16>
    %cst_30 = arith.constant dense<0.000000e+00> : vector<48x324xf32>
    %34 = tpu.matmul %33, %31, %cst_30 {dimension_numbers = #tpu.dot_dimension_numbers<[1], [1], [0], [0], [0, 0, 1, 0], [], []>} : vector<48x128xbf16>, vector<324x128xbf16>, vector<48x324xf32> -> vector<48x324xf32>
    %35 = arith.addf %30, %34 : vector<48x324xf32>
    %c37 = arith.constant 37 : index
    %c0_31 = arith.constant 0 : index
    %36 = vector.load %arg1[%c37, %c0_31] : memref<362x128xbf16, #tpu.memory_space<vmem>>, vector<324x128xbf16>
    %c7 = arith.constant 7 : index
    %c0_32 = arith.constant 0 : index
    %c0_33 = arith.constant 0 : index
    %37 = vector.load %arg2[%c7, %c0_32, %c0_33] : memref<9x48x128xbf16, #tpu.memory_space<vmem>>, vector<1x48x128xbf16>
    %38 = vector.shape_cast %37 : vector<1x48x128xbf16> to vector<48x128xbf16>
    %cst_34 = arith.constant dense<0.000000e+00> : vector<48x324xf32>
    %39 = tpu.matmul %38, %36, %cst_34 {dimension_numbers = #tpu.dot_dimension_numbers<[1], [1], [0], [0], [0, 0, 1, 0], [], []>} : vector<48x128xbf16>, vector<324x128xbf16>, vector<48x324xf32> -> vector<48x324xf32>
    %40 = arith.addf %35, %39 : vector<48x324xf32>
    %c38 = arith.constant 38 : index
    %c0_35 = arith.constant 0 : index
    %41 = vector.load %arg1[%c38, %c0_35] : memref<362x128xbf16, #tpu.memory_space<vmem>>, vector<324x128xbf16>
    %c8 = arith.constant 8 : index
    %c0_36 = arith.constant 0 : index
    %c0_37 = arith.constant 0 : index
    %42 = vector.load %arg2[%c8, %c0_36, %c0_37] : memref<9x48x128xbf16, #tpu.memory_space<vmem>>, vector<1x48x128xbf16>
    %43 = vector.shape_cast %42 : vector<1x48x128xbf16> to vector<48x128xbf16>
    %cst_38 = arith.constant dense<0.000000e+00> : vector<48x324xf32>
    %44 = tpu.matmul %43, %41, %cst_38 {dimension_numbers = #tpu.dot_dimension_numbers<[1], [1], [0], [0], [0, 0, 1, 0], [], []>} : vector<48x128xbf16>, vector<324x128xbf16>, vector<48x324xf32> -> vector<48x324xf32>
    %45 = arith.addf %40, %44 : vector<48x324xf32>
    %c0_39 = arith.constant 0 : index
    %c0_40 = arith.constant 0 : index
    %46 = vector.load %arg3[%c0_39, %c0_40] : memref<48x1xf32, #tpu.memory_space<vmem>>, vector<48x1xf32>
    %47 = vector.broadcast %46 : vector<48x1xf32> to vector<48x324xf32>
    %48 = arith.addf %45, %47 : vector<48x324xf32>
    %c0_41 = arith.constant 0 : index
    %c0_42 = arith.constant 0 : index
    %49 = vector.load %arg4[%c0_41, %c0_42] : memref<48x324xf32, #tpu.memory_space<vmem>>, vector<48x324xf32>
    tpu.vector_store %arg4[%c0_41, %c0_42], %48 {strides = array<i32>} : memref<48x324xf32, #tpu.memory_space<vmem>>, vector<48x324xf32>,
    return
  }
  func.func @transform_0(%arg0: i32) -> (i32, i32) {
    %c0_i32 = arith.constant 0 : i32
    %c0_i32_0 = arith.constant 0 : i32
    %c0_i32_1 = arith.constant 0 : i32
    return %c0_i32, %c0_i32_0 : i32, i32
  }
  func.func @transform_1(%arg0: i32) -> (i32, i32, i32) {
    %c0_i32 = arith.constant 0 : i32
    %c0_i32_0 = arith.constant 0 : i32
    %c0_i32_1 = arith.constant 0 : i32
    %c0_i32_2 = arith.constant 0 : i32
    return %c0_i32, %c0_i32_0, %c0_i32_1 : i32, i32, i32
  }
  func.func @transform_2(%arg0: i32) -> (i32, i32) {
    %c0_i32 = arith.constant 0 : i32
    %c0_i32_0 = arith.constant 0 : i32
    %c0_i32_1 = arith.constant 0 : i32
    return %c0_i32, %c0_i32_0 : i32, i32
  }
  func.func @transform_3(%arg0: i32) -> (i32, i32) {
    %c0_i32 = arith.constant 0 : i32
    %c0_i32_0 = arith.constant 0 : i32
    %c0_i32_1 = arith.constant 0 : i32
    return %c0_i32, %c0_i32_0 : i32, i32
  }
}

</mosaic_0001>

<llo_original>
// kernel: tpu_custom_call.1
$region0: #{tpu_custom_call.1}
  #allocation0 [shape = 'u32[]', space=smem, size = 0x4, offset = 0x4, fixed_abs, tag = 'smem constant byte address 0x4 - core index']
  #allocation1 [shape = 'u32[72,128]{1,0:T(1,128)}', space=vmem, size = 0x9000, scoped, tag = 'internal scratch']
  %s0 = inlined_call_operand.hbm [shape: bf16[362,128], index: 0, kind: input, shape index: {}]
  %s1 = inlined_call_operand.hbm [shape: bf16[9,48,128], index: 1, kind: input, shape index: {}]
  %s2 = inlined_call_operand.vmem [shape: f32[48,1], index: 2, kind: input, shape index: {}]
  %s3 = inlined_call_operand.hbm [shape: f32[48,324], index: 3, kind: output, shape index: {}]
  %s4 = sld [smem:[#allocation0]]
  $region30: #{tpu_custom_call.1} parent=0
    _
  %s6 = ssub.s32 1, %s4
  %s7 = scalar_select 0, %s6, %s4
  $region1: #{tpu_custom_call.1} parent=0
    #allocation2 [shape = 'u8[94208]{0}', space=vmem, size = 0x17000, scoped, tag = 'input window, operand 0, single buffered']
    #allocation3 [shape = 's32[1]{0}', space=sflag, size = 0x4, scoped, tag = 'scoped memory for tpu_custom_call.1']
    #allocation4 [shape = 's32[1]{0}', space=sflag, size = 0x4, scoped, tag = 'scoped memory for tpu_custom_call.1']
    #allocation5 [shape = 'u8[110592]{0}', space=vmem, size = 0x1b000, scoped, tag = 'input window, operand 1, single buffered']
    #allocation6 [shape = 's32[1]{0}', space=sflag, size = 0x4, scoped, tag = 'scoped memory for tpu_custom_call.1']
    #allocation7 [shape = 'u8[73728]{0}', space=vmem, size = 0x12000, scoped, tag = 'output window, operand 0, single buffered']
    %8 = vsyncpa [#allocation3], 0
    %9 = vsyncpa [#allocation6], 0
    %10 = vsyncpa [#allocation4], 0
    // Predicated region
    $region2: #{tpu_custom_call.1} parent=1 // pred_check
      _
    $region3: #{tpu_custom_call.1} parent=1 // pred_check_branch
      %12 = sbr.rel (0) target = $region5
    $region4: #{tpu_custom_call.1} parent=1 // pred_region
      %14 = vsyncadd [#allocation3], 0
      %s15 = sshll.u32 %s0, 4
      %s16 = int_to_ptr.hbm [resolvable:$true] %s15
      %s17 = sshll.u32 [#allocation2], 4
      %s18 = int_to_ptr.vmem [resolvable:$true] %s17
      %23 = dma.hbm_to_vmem [thread:$0]  %s16, 2944, %s18, [#allocation3], 64, 64, 4
    $region5: #{tpu_custom_call.1} parent=1 // pred_fallthru
      _
    // Predicated region
    $region6: #{tpu_custom_call.1} parent=1 // pred_check
      _
    $region7: #{tpu_custom_call.1} parent=1 // pred_check_branch
      %25 = sbr.rel (0) target = $region9
    $region8: #{tpu_custom_call.1} parent=1 // pred_region
      %27 = vsyncadd [#allocation6], 0
      %s28 = sshll.u32 %s1, 4
      %s29 = int_to_ptr.hbm [resolvable:$true] %s28
      %s30 = sshll.u32 [#allocation5], 4
      %s31 = int_to_ptr.vmem [resolvable:$true] %s30
      %36 = dma.hbm_to_vmem [thread:$0]  %s29, 3456, %s31, [#allocation6], 64, 64, 4
    $region9: #{tpu_custom_call.1} parent=1 // pred_fallthru
      _
    // Predicated region
    $region10: #{tpu_custom_call.1} parent=1 // pred_check
      _
    $region11: #{tpu_custom_call.1} parent=1 // pred_check_branch
      %38 = sbr.rel (0) target = $region13
    $region12: #{tpu_custom_call.1} parent=1 // pred_region
      _
    $region13: #{tpu_custom_call.1} parent=1 // pred_fallthru
      _
    // Predicated region
    $region14: #{tpu_custom_call.1} parent=1 // pred_check
      _
    $region15: #{tpu_custom_call.1} parent=1 // pred_check_branch
      %40 = sbr.rel (0) target = $region17
    $region16: #{tpu_custom_call.1} parent=1 // pred_region
      %42 = dma.done [#allocation3], 2944
    $region17: #{tpu_custom_call.1} parent=1 // pred_fallthru
      _
    // Predicated region
    $region18: #{tpu_custom_call.1} parent=1 // pred_check
      _
    $region19: #{tpu_custom_call.1} parent=1 // pred_check_branch
      %44 = sbr.rel (0) target = $region21
    $region20: #{tpu_custom_call.1} parent=1 // pred_region
      %46 = dma.done [#allocation6], 3456
    $region21: #{tpu_custom_call.1} parent=1 // pred_fallthru
      _
    %v48 = vld [vmem:[#allocation2] sm:$0xf]
    %v49 = vld [vmem:[#allocation2 + $0x4] sm:$0xf]
    %v50 = vld [vmem:[#allocation2 + $0x8] sm:$0xf]
    %v51 = vld [vmem:[#allocation2 + $0xc] sm:$0xf]
    %v52 = vld [vmem:[#allocation2 + $0x10] sm:$0xf]
    %v53 = vld [vmem:[#allocation2 + $0x14] sm:$0xf]
    %v54 = vld [vmem:[#allocation2 + $0x18] sm:$0xf]
    %v55 = vld [vmem:[#allocation2 + $0x1c] sm:$0xf]
    %v56 = vld [vmem:[#allocation2 + $0x20] sm:$0xf]
    %v57 = vld [vmem:[#allocation2 + $0x24] sm:$0xf]
    %v58 = vld [vmem:[#allocation2 + $0x28] sm:$0xf]
    %v59 = vld [vmem:[#allocation2 + $0x2c] sm:$0xf]
    %v60 = vld [vmem:[#allocation2 + $0x30] sm:$0xf]
    %v61 = vld [vmem:[#allocation2 + $0x34] sm:$0xf]
    %v62 = vld [vmem:[#allocation2 + $0x38] sm:$0xf]
    %v63 = vld [vmem:[#allocation2 + $0x3c] sm:$0xf]
    %v64 = vld [vmem:[#allocation2 + $0x40] sm:$0xf]
    %v65 = vld [vmem:[#allocation2 + $0x44] sm:$0xf]
    %v66 = vld [vmem:[#allocation2 + $0x48] sm:$0xf]
    %v67 = vld [vmem:[#allocation2 + $0x4c] sm:$0xf]
    %v68 = vld [vmem:[#allocation2 + $0x50] sm:$0xf]
    %v69 = vld [vmem:[#allocation2 + $0x54] sm:$0xf]
    %v70 = vld [vmem:[#allocation2 + $0x58] sm:$0xf]
    %v71 = vld [vmem:[#allocation2 + $0x5c] sm:$0xf]
    %v72 = vld [vmem:[#allocation2 + $0x60] sm:$0xf]
    %v73 = vld [vmem:[#allocation2 + $0x64] sm:$0xf]
    %v74 = vld [vmem:[#allocation2 + $0x68] sm:$0xf]
    %v75 = vld [vmem:[#allocation2 + $0x6c] sm:$0xf]
    %v76 = vld [vmem:[#allocation2 + $0x70] sm:$0xf]
    %v77 = vld [vmem:[#allocation2 + $0x74] sm:$0xf]
    %v78 = vld [vmem:[#allocation2 + $0x78] sm:$0xf]
    %v79 = vld [vmem:[#allocation2 + $0x7c] sm:$0xf]
    %v80 = vld [vmem:[#allocation2 + $0x80] sm:$0xf]
    %v81 = vld [vmem:[#allocation2 + $0x84] sm:$0xf]
    %v82 = vld [vmem:[#allocation2 + $0x88] sm:$0xf]
    %v83 = vld [vmem:[#allocation2 + $0x8c] sm:$0xf]
    %v84 = vld [vmem:[#allocation2 + $0x90] sm:$0xf]
    %v85 = vld [vmem:[#allocation2 + $0x94] sm:$0xf]
    %v86 = vld [vmem:[#allocation2 + $0x98] sm:$0xf]
    %v87 = vld [vmem:[#allocation2 + $0x9c] sm:$0xf]
    %v88 = vld [vmem:[#allocation2 + $0xa0] sm:$0x3]
    %v89 = vld [vmem:[#allocation5] sm:$0xf]
    %v90 = vld [vmem:[#allocation5 + $0x4] sm:$0xf]
    %v91 = vld [vmem:[#allocation5 + $0x8] sm:$0xf]
    %v92 = vld [vmem:[#allocation5 + $0xc] sm:$0xf]
    %v93 = vld [vmem:[#allocation5 + $0x10] sm:$0xf]
    %v94 = vld [vmem:[#allocation5 + $0x14] sm:$0xf]
    %v95 = vld [vmem:[#allocation2 + $0xa0] sm:$0x7]
    %s96 = scalar_lea.vmem [#allocation5], 24
    %v97 = vld [vmem:[%s96] sm:$0xf]
    %v98 = vld [vmem:[%s96 + $0x4] sm:$0xf]
    %v99 = vld [vmem:[%s96 + $0x8] sm:$0xf]
    %v100 = vld [vmem:[%s96 + $0xc] sm:$0xf]
    %v101 = vld [vmem:[%s96 + $0x10] sm:$0xf]
    %v102 = vld [vmem:[%s96 + $0x14] sm:$0xf]
    %v109 = vunpack.c.l.b16 %v97
    %v110 = vunpack.c.l.b16 %v98
    %v111 = vunpack.c.l.b16 %v99
    %v112 = vunpack.c.l.b16 %v100
    %v113 = vunpack.c.l.b16 %v101
    %v114 = vunpack.c.l.b16 %v102
    %v115 = vpack.c.b16 %v110, %v109
    %v116 = vpack.c.b16 %v112, %v111
    %v117 = vpack.c.b16 %v114, %v113
    %v162 = vunpack.c.l.b16 %v48
    %v163 = vunpack.c.l.b16 %v49
    %v164 = vunpack.c.l.b16 %v50
    %v165 = vunpack.c.l.b16 %v51
    %v166 = vunpack.c.l.b16 %v52
    %v167 = vunpack.c.l.b16 %v53
    %v168 = vunpack.c.l.b16 %v54
    %v169 = vunpack.c.l.b16 %v55
    %v170 = vunpack.c.l.b16 %v56
    %v171 = vunpack.c.l.b16 %v57
    %v172 = vunpack.c.l.b16 %v58
    %v173 = vunpack.c.l.b16 %v59
    %v174 = vunpack.c.l.b16 %v60
    %v175 = vunpack.c.l.b16 %v61
    %v176 = vunpack.c.l.b16 %v62
    %v177 = vunpack.c.l.b16 %v63
    %v178 = vunpack.c.l.b16 %v64
    %v179 = vunpack.c.l.b16 %v65
    %v180 = vunpack.c.l.b16 %v66
    %v181 = vunpack.c.l.b16 %v67
    %v182 = vunpack.c.l.b16 %v68
    %v183 = vunpack.c.l.b16 %v69
    %v184 = vunpack.c.l.b16 %v70
    %v185 = vunpack.c.l.b16 %v71
    %v186 = vunpack.c.l.b16 %v72
    %v187 = vunpack.c.l.b16 %v73
    %v188 = vunpack.c.l.b16 %v74
    %v189 = vunpack.c.l.b16 %v75
    %v190 = vunpack.c.l.b16 %v76
    %v191 = vunpack.c.l.b16 %v77
    %v192 = vunpack.c.l.b16 %v78
    %v193 = vunpack.c.l.b16 %v79
    %v194 = vunpack.c.l.b16 %v80
    %v195 = vunpack.c.l.b16 %v81
    %v196 = vunpack.c.l.b16 %v82
    %v197 = vunpack.c.l.b16 %v83
    %v198 = vunpack.c.l.b16 %v84
    %v199 = vunpack.c.l.b16 %v85
    %v200 = vunpack.c.l.b16 %v86
    %v201 = vunpack.c.l.b16 %v87
    %v202 = vunpack.c.l.b16 %v95
    %v203 = vpack.c.b16 %v163, %v162
    %v204 = vpack.c.b16 %v165, %v164
    %v205 = vpack.c.b16 %v167, %v166
    %v206 = vpack.c.b16 %v169, %v168
    %v207 = vpack.c.b16 %v171, %v170
    %v208 = vpack.c.b16 %v173, %v172
    %v209 = vpack.c.b16 %v175, %v174
    %v210 = vpack.c.b16 %v177, %v176
    %v211 = vpack.c.b16 %v179, %v178
    %v212 = vpack.c.b16 %v181, %v180
    %v213 = vpack.c.b16 %v183, %v182
    %v214 = vpack.c.b16 %v185, %v184
    %v215 = vpack.c.b16 %v187, %v186
    %v216 = vpack.c.b16 %v189, %v188
    %v217 = vpack.c.b16 %v191, %v190
    %v218 = vpack.c.b16 %v193, %v192
    %v219 = vpack.c.b16 %v195, %v194
    %v220 = vpack.c.b16 %v197, %v196
    %v221 = vpack.c.b16 %v199, %v198
    %v222 = vpack.c.b16 %v201, %v200
    %v223 = vpack.c.b16 %v202, %v202
    %vm224 = vsmask.f32 7424
    %v226 = vshrl.u32 %v203, 16
    %v228 = vshll.u32 %v203, 16
    %v230 = vrot.slane %v228, 1
    %v231 = vor.u32 %v226, %v230
    %v233 = vshll.u32 %v204, 16
    %v235 = vrot.slane %v233, 1
    %v236 = vsel %vm224, %v231, %v235
    %v237 = vshrl.u32 %v204, 16
    %v239 = vor.u32 %v237, %v235
    %v241 = vshll.u32 %v205, 16
    %v243 = vrot.slane %v241, 1
    %v244 = vsel %vm224, %v239, %v243
    %v245 = vshrl.u32 %v205, 16
    %v247 = vor.u32 %v245, %v243
    %v249 = vshll.u32 %v206, 16
    %v251 = vrot.slane %v249, 1
    %v252 = vsel %vm224, %v247, %v251
    %v253 = vshrl.u32 %v206, 16
    %v255 = vor.u32 %v253, %v251
    %v257 = vshll.u32 %v207, 16
    %v259 = vrot.slane %v257, 1
    %v260 = vsel %vm224, %v255, %v259
    %v261 = vshrl.u32 %v207, 16
    %v263 = vor.u32 %v261, %v259
    %v265 = vshll.u32 %v208, 16
    %v267 = vrot.slane %v265, 1
    %v268 = vsel %vm224, %v263, %v267
    %v269 = vshrl.u32 %v208, 16
    %v271 = vor.u32 %v269, %v267
    %v273 = vshll.u32 %v209, 16
    %v275 = vrot.slane %v273, 1
    %v276 = vsel %vm224, %v271, %v275
    %v277 = vshrl.u32 %v209, 16
    %v279 = vor.u32 %v277, %v275
    %v281 = vshll.u32 %v210, 16
    %v283 = vrot.slane %v281, 1
    %v284 = vsel %vm224, %v279, %v283
    %v285 = vshrl.u32 %v210, 16
    %v287 = vor.u32 %v285, %v283
    %v289 = vshll.u32 %v211, 16
    %v291 = vrot.slane %v289, 1
    %v292 = vsel %vm224, %v287, %v291
    %v293 = vshrl.u32 %v211, 16
    %v295 = vor.u32 %v293, %v291
    %v297 = vshll.u32 %v212, 16
    %v299 = vrot.slane %v297, 1
    %v300 = vsel %vm224, %v295, %v299
    %v301 = vshrl.u32 %v212, 16
    %v303 = vor.u32 %v301, %v299
    %v305 = vshll.u32 %v213, 16
    %v307 = vrot.slane %v305, 1
    %v308 = vsel %vm224, %v303, %v307
    %v309 = vshrl.u32 %v213, 16
    %v311 = vor.u32 %v309, %v307
    %v313 = vshll.u32 %v214, 16
    %v315 = vrot.slane %v313, 1
    %v316 = vsel %vm224, %v311, %v315
    %v317 = vshrl.u32 %v214, 16
    %v319 = vor.u32 %v317, %v315
    %v321 = vshll.u32 %v215, 16
    %v323 = vrot.slane %v321, 1
    %v324 = vsel %vm224, %v319, %v323
    %v325 = vshrl.u32 %v215, 16
    %v327 = vor.u32 %v325, %v323
    %v329 = vshll.u32 %v216, 16
    %v331 = vrot.slane %v329, 1
    %v332 = vsel %vm224, %v327, %v331
    %v333 = vshrl.u32 %v216, 16
    %v335 = vor.u32 %v333, %v331
    %v337 = vshll.u32 %v217, 16
    %v339 = vrot.slane %v337, 1
    %v340 = vsel %vm224, %v335, %v339
    %v341 = vshrl.u32 %v217, 16
    %v343 = vor.u32 %v341, %v339
    %v345 = vshll.u32 %v218, 16
    %v347 = vrot.slane %v345, 1
    %v348 = vsel %vm224, %v343, %v347
    %v349 = vshrl.u32 %v218, 16
    %v351 = vor.u32 %v349, %v347
    %v353 = vshll.u32 %v219, 16
    %v355 = vrot.slane %v353, 1
    %v356 = vsel %vm224, %v351, %v355
    %v357 = vshrl.u32 %v219, 16
    %v359 = vor.u32 %v357, %v355
    %v361 = vshll.u32 %v220, 16
    %v363 = vrot.slane %v361, 1
    %v364 = vsel %vm224, %v359, %v363
    %v365 = vshrl.u32 %v220, 16
    %v367 = vor.u32 %v365, %v363
    %v369 = vshll.u32 %v221, 16
    %v371 = vrot.slane %v369, 1
    %v372 = vsel %vm224, %v367, %v371
    %v373 = vshrl.u32 %v221, 16
    %v375 = vor.u32 %v373, %v371
    %v377 = vshll.u32 %v222, 16
    %v379 = vrot.slane %v377, 1
    %v380 = vsel %vm224, %v375, %v379
    %v381 = vshrl.u32 %v222, 16
    %v383 = vor.u32 %v381, %v379
    %v385 = vshll.u32 %v223, 16
    %v387 = vrot.slane %v385, 1
    %v388 = vsel %vm224, %v383, %v387
    %v389 = vshrl.u32 %v223, 16
    %v391 = vor.u32 %v389, %v387
    %413 = vmatpush.bf16.xpose.msra.mxu0 %v292
    %414 = vmatpush.bf16.xpose.msra.mxu0 %v284
    %415 = vmatpush.bf16.xpose.msra.mxu0 %v276
    %416 = vmatpush.bf16.xpose.msra.mxu0 %v268
    %417 = vmatpush.bf16.xpose.msra.mxu0 %v260
    %418 = vmatpush.bf16.xpose.msra.mxu0 %v252
    %419 = vmatpush.bf16.xpose.msra.mxu0 %v244
    %420 = vmatpush.bf16.xpose.msra.mxu0 %v236
    %421 = vmatmul.bf16.gmra.mxu0 %v115
    %v422 = vpop.f32.mrf.mxu0
    %v423 = vadd.f32 0.0, %v422
    %v424 = vpop.f32.mrf.mxu0
    %v425 = vadd.f32 0.0, %v424
    %426 = vmatmul.bf16.gmra.mxu0 %v116
    %v427 = vpop.f32.mrf.mxu0
    %v428 = vadd.f32 0.0, %v427
    %v429 = vpop.f32.mrf.mxu0
    %v430 = vadd.f32 0.0, %v429
    %431 = vmatmul.bf16.gmra.mxu0 %v117
    %v432 = vpop.f32.mrf.mxu0
    %v433 = vadd.f32 0.0, %v432
    %v434 = vpop.f32.mrf.mxu0
    %v435 = vadd.f32 0.0, %v434
    %436 = vdwg.mxu0
    %437 = vmatpush.bf16.xpose.msra.mxu0 %v356
    %438 = vmatpush.bf16.xpose.msra.mxu0 %v348
    %439 = vmatpush.bf16.xpose.msra.mxu0 %v340
    %440 = vmatpush.bf16.xpose.msra.mxu0 %v332
    %441 = vmatpush.bf16.xpose.msra.mxu0 %v324
    %442 = vmatpush.bf16.xpose.msra.mxu0 %v316
    %443 = vmatpush.bf16.xpose.msra.mxu0 %v308
    %444 = vmatpush.bf16.xpose.msra.mxu0 %v300
    %445 = vmatmul.bf16.gmra.mxu0 %v115
    %v446 = vpop.f32.mrf.mxu0
    %v447 = vadd.f32 0.0, %v446
    %v448 = vpop.f32.mrf.mxu0
    %v449 = vadd.f32 0.0, %v448
    %450 = vmatmul.bf16.gmra.mxu0 %v116
    %v451 = vpop.f32.mrf.mxu0
    %v452 = vadd.f32 0.0, %v451
    %v453 = vpop.f32.mrf.mxu0
    %v454 = vadd.f32 0.0, %v453
    %455 = vmatmul.bf16.gmra.mxu0 %v117
    %v456 = vpop.f32.mrf.mxu0
    %v457 = vadd.f32 0.0, %v456
    %v458 = vpop.f32.mrf.mxu0
    %v459 = vadd.f32 0.0, %v458
    %460 = vdwg.mxu0
    %461 = vmatpush.bf16.xpose.msra.mxu0 0
    %462 = vmatpush.bf16.xpose.msra.mxu0 0
    %463 = vmatpush.bf16.xpose.msra.mxu0 0
    %464 = vmatpush.bf16.xpose.msra.mxu0 %v391
    %465 = vmatpush.bf16.xpose.msra.mxu0 %v388
    %466 = vmatpush.bf16.xpose.msra.mxu0 %v380
    %467 = vmatpush.bf16.xpose.msra.mxu0 %v372
    %468 = vmatpush.bf16.xpose.msra.mxu0 %v364
    %469 = vmatmul.bf16.gmra.mxu0 %v115
    %v470 = vpop.f32.mrf.mxu0
    %v471 = vadd.f32 0.0, %v470
    %v472 = vpop.f32.mrf.mxu0
    %v473 = vadd.f32 0.0, %v472
    %474 = vmatmul.bf16.gmra.mxu0 %v116
    %v475 = vpop.f32.mrf.mxu0
    %v476 = vadd.f32 0.0, %v475
    %v477 = vpop.f32.mrf.mxu0
    %v478 = vadd.f32 0.0, %v477
    %479 = vmatmul.bf16.gmra.mxu0 %v117
    %v480 = vpop.f32.mrf.mxu0
    %v481 = vadd.f32 0.0, %v480
    %v482 = vpop.f32.mrf.mxu0
    %v483 = vadd.f32 0.0, %v482
    %484 = vdwg.mxu0
    %v491 = vunpack.c.l.b16 %v89
    %v492 = vunpack.c.l.b16 %v90
    %v493 = vunpack.c.l.b16 %v91
    %v494 = vunpack.c.l.b16 %v92
    %v495 = vunpack.c.l.b16 %v93
    %v496 = vunpack.c.l.b16 %v94
    %v497 = vpack.c.b16 %v492, %v491
    %v498 = vpack.c.b16 %v494, %v493
    %v499 = vpack.c.b16 %v496, %v495
    %v504 = vunpack.c.l.b16 %v88
    %v505 = vpack.c.b16 %v504, %v504
    %527 = vmatpush.bf16.xpose.msra.mxu0 %v210
    %528 = vmatpush.bf16.xpose.msra.mxu0 %v209
    %529 = vmatpush.bf16.xpose.msra.mxu0 %v208
    %530 = vmatpush.bf16.xpose.msra.mxu0 %v207
    %531 = vmatpush.bf16.xpose.msra.mxu0 %v206
    %532 = vmatpush.bf16.xpose.msra.mxu0 %v205
    %533 = vmatpush.bf16.xpose.msra.mxu0 %v204
    %534 = vmatpush.bf16.xpose.msra.mxu0 %v203
    %535 = vmatmul.bf16.gmra.mxu0 %v497
    %v536 = vpop.f32.mrf.mxu0
    %v537 = vadd.f32 %v423, %v536
    %v538 = vpop.f32.mrf.mxu0
    %v539 = vadd.f32 %v425, %v538
    %540 = vmatmul.bf16.gmra.mxu0 %v498
    %v541 = vpop.f32.mrf.mxu0
    %v542 = vadd.f32 %v428, %v541
    %v543 = vpop.f32.mrf.mxu0
    %v544 = vadd.f32 %v430, %v543
    %545 = vmatmul.bf16.gmra.mxu0 %v499
    %v546 = vpop.f32.mrf.mxu0
    %v547 = vadd.f32 %v433, %v546
    %v548 = vpop.f32.mrf.mxu0
    %v549 = vadd.f32 %v435, %v548
    %550 = vdwg.mxu0
    %551 = vmatpush.bf16.xpose.msra.mxu0 %v218
    %552 = vmatpush.bf16.xpose.msra.mxu0 %v217
    %553 = vmatpush.bf16.xpose.msra.mxu0 %v216
    %554 = vmatpush.bf16.xpose.msra.mxu0 %v215
    %555 = vmatpush.bf16.xpose.msra.mxu0 %v214
    %556 = vmatpush.bf16.xpose.msra.mxu0 %v213
    %557 = vmatpush.bf16.xpose.msra.mxu0 %v212
    %558 = vmatpush.bf16.xpose.msra.mxu0 %v211
    %559 = vmatmul.bf16.gmra.mxu0 %v497
    %v560 = vpop.f32.mrf.mxu0
    %v561 = vadd.f32 %v447, %v560
    %v562 = vpop.f32.mrf.mxu0
    %v563 = vadd.f32 %v449, %v562
    %564 = vmatmul.bf16.gmra.mxu0 %v498
    %v565 = vpop.f32.mrf.mxu0
    %v566 = vadd.f32 %v452, %v565
    %v567 = vpop.f32.mrf.mxu0
    %v568 = vadd.f32 %v454, %v567
    %569 = vmatmul.bf16.gmra.mxu0 %v499
    %v570 = vpop.f32.mrf.mxu0
    %v571 = vadd.f32 %v457, %v570
    %v572 = vpop.f32.mrf.mxu0
    %v573 = vadd.f32 %v459, %v572
    %574 = vdwg.mxu0
    %575 = vmatpush.bf16.xpose.msra.mxu0 0
    %576 = vmatpush.bf16.xpose.msra.mxu0 0
    %577 = vmatpush.bf16.xpose.msra.mxu0 0
    %578 = vmatpush.bf16.xpose.msra.mxu0 %v505
    %579 = vmatpush.bf16.xpose.msra.mxu0 %v222
    %580 = vmatpush.bf16.xpose.msra.mxu0 %v221
    %581 = vmatpush.bf16.xpose.msra.mxu0 %v220
    %582 = vmatpush.bf16.xpose.msra.mxu0 %v219
    %583 = vmatmul.bf16.gmra.mxu0 %v497
    %v584 = vpop.f32.mrf.mxu0
    %v585 = vadd.f32 %v471, %v584
    %v586 = vpop.f32.mrf.mxu0
    %v587 = vadd.f32 %v473, %v586
    %588 = vmatmul.bf16.gmra.mxu0 %v498
    %v589 = vpop.f32.mrf.mxu0
    %v590 = vadd.f32 %v476, %v589
    %v591 = vpop.f32.mrf.mxu0
    %v592 = vadd.f32 %v478, %v591
    %593 = vmatmul.bf16.gmra.mxu0 %v499
    %v594 = vpop.f32.mrf.mxu0
    %v595 = vadd.f32 %v481, %v594
    %v596 = vpop.f32.mrf.mxu0
    %v597 = vadd.f32 %v483, %v596
    %598 = vdwg.mxu0
    %v599 = vld [vmem:[#allocation2] sm:$0xe]
    %s600 = scalar_lea.vmem [#allocation5], 48
    %v601 = vld [vmem:[%s600] sm:$0xf]
    %v602 = vld [vmem:[%s600 + $0x4] sm:$0xf]
    %v603 = vld [vmem:[%s600 + $0x8] sm:$0xf]
    %v604 = vld [vmem:[%s600 + $0xc] sm:$0xf]
    %v605 = vld [vmem:[%s600 + $0x10] sm:$0xf]
    %v606 = vld [vmem:[%s600 + $0x14] sm:$0xf]
    %v613 = vunpack.c.l.b16 %v601
    %v614 = vunpack.c.l.b16 %v602
    %v615 = vunpack.c.l.b16 %v603
    %v616 = vunpack.c.l.b16 %v604
    %v617 = vunpack.c.l.b16 %v605
    %v618 = vunpack.c.l.b16 %v606
    %v619 = vpack.c.b16 %v614, %v613
    %v620 = vpack.c.b16 %v616, %v615
    %v621 = vpack.c.b16 %v618, %v617
    %v626 = vunpack.c.l.b16 %v599
    %v627 = vpack.c.b16 %v163, %v626
    %vm628 = vcmask 1046528
    %v629 = vrot.slane %v627, 1
    %v630 = vrot.slane %v204, 1
    %v631 = vsel %vm628, %v629, %v630
    %v632 = vrot.slane %v205, 1
    %v633 = vsel %vm628, %v630, %v632
    %v634 = vrot.slane %v206, 1
    %v635 = vsel %vm628, %v632, %v634
    %v636 = vrot.slane %v207, 1
    %v637 = vsel %vm628, %v634, %v636
    %v638 = vrot.slane %v208, 1
    %v639 = vsel %vm628, %v636, %v638
    %v640 = vrot.slane %v209, 1
    %v641 = vsel %vm628, %v638, %v640
    %v642 = vrot.slane %v210, 1
    %v643 = vsel %vm628, %v640, %v642
    %v644 = vrot.slane %v211, 1
    %v645 = vsel %vm628, %v642, %v644
    %v646 = vrot.slane %v212, 1
    %v647 = vsel %vm628, %v644, %v646
    %v648 = vrot.slane %v213, 1
    %v649 = vsel %vm628, %v646, %v648
    %v650 = vrot.slane %v214, 1
    %v651 = vsel %vm628, %v648, %v650
    %v652 = vrot.slane %v215, 1
    %v653 = vsel %vm628, %v650, %v652
    %v654 = vrot.slane %v216, 1
    %v655 = vsel %vm628, %v652, %v654
    %v656 = vrot.slane %v217, 1
    %v657 = vsel %vm628, %v654, %v656
    %v658 = vrot.slane %v218, 1
    %v659 = vsel %vm628, %v656, %v658
    %v660 = vrot.slane %v219, 1
    %v661 = vsel %vm628, %v658, %v660
    %v662 = vrot.slane %v220, 1
    %v663 = vsel %vm628, %v660, %v662
    %v664 = vrot.slane %v221, 1
    %v665 = vsel %vm628, %v662, %v664
    %v666 = vrot.slane %v222, 1
    %v667 = vsel %vm628, %v664, %v666
    %v668 = vrot.slane %v223, 1
    %v669 = vsel %vm628, %v666, %v668
    %691 = vmatpush.bf16.xpose.msra.mxu0 %v645
    %692 = vmatpush.bf16.xpose.msra.mxu0 %v643
    %693 = vmatpush.bf16.xpose.msra.mxu0 %v641
    %694 = vmatpush.bf16.xpose.msra.mxu0 %v639
    %695 = vmatpush.bf16.xpose.msra.mxu0 %v637
    %696 = vmatpush.bf16.xpose.msra.mxu0 %v635
    %697 = vmatpush.bf16.xpose.msra.mxu0 %v633
    %698 = vmatpush.bf16.xpose.msra.mxu0 %v631
    %699 = vmatmul.bf16.gmra.mxu0 %v619
    %v700 = vpop.f32.mrf.mxu0
    %v701 = vadd.f32 0.0, %v700
    %v702 = vpop.f32.mrf.mxu0
    %v703 = vadd.f32 0.0, %v702
    %704 = vmatmul.bf16.gmra.mxu0 %v620
    %v705 = vpop.f32.mrf.mxu0
    %v706 = vadd.f32 0.0, %v705
    %v707 = vpop.f32.mrf.mxu0
    %v708 = vadd.f32 0.0, %v707
    %709 = vmatmul.bf16.gmra.mxu0 %v621
    %v710 = vpop.f32.mrf.mxu0
    %v711 = vadd.f32 0.0, %v710
    %v712 = vpop.f32.mrf.mxu0
    %v713 = vadd.f32 0.0, %v712
    %714 = vdwg.mxu0
    %715 = vmatpush.bf16.xpose.msra.mxu0 %v661
    %716 = vmatpush.bf16.xpose.msra.mxu0 %v659
    %717 = vmatpush.bf16.xpose.msra.mxu0 %v657
    %718 = vmatpush.bf16.xpose.msra.mxu0 %v655
    %719 = vmatpush.bf16.xpose.msra.mxu0 %v653
    %720 = vmatpush.bf16.xpose.msra.mxu0 %v651
    %721 = vmatpush.bf16.xpose.msra.mxu0 %v649
    %722 = vmatpush.bf16.xpose.msra.mxu0 %v647
    %723 = vmatmul.bf16.gmra.mxu0 %v619
    %v724 = vpop.f32.mrf.mxu0
    %v725 = vadd.f32 0.0, %v724
    %v726 = vpop.f32.mrf.mxu0
    %v727 = vadd.f32 0.0, %v726
    %728 = vmatmul.bf16.gmra.mxu0 %v620
    %v729 = vpop.f32.mrf.mxu0
    %v730 = vadd.f32 0.0, %v729
    %v731 = vpop.f32.mrf.mxu0
    %v732 = vadd.f32 0.0, %v731
    %733 = vmatmul.bf16.gmra.mxu0 %v621
    %v734 = vpop.f32.mrf.mxu0
    %v735 = vadd.f32 0.0, %v734
    %v736 = vpop.f32.mrf.mxu0
    %v737 = vadd.f32 0.0, %v736
    %738 = vdwg.mxu0
    %739 = vmatpush.bf16.xpose.msra.mxu0 0
    %740 = vmatpush.bf16.xpose.msra.mxu0 0
    %741 = vmatpush.bf16.xpose.msra.mxu0 0
    %742 = vmatpush.bf16.xpose.msra.mxu0 %v668
    %743 = vmatpush.bf16.xpose.msra.mxu0 %v669
    %744 = vmatpush.bf16.xpose.msra.mxu0 %v667
    %745 = vmatpush.bf16.xpose.msra.mxu0 %v665
    %746 = vmatpush.bf16.xpose.msra.mxu0 %v663
    %747 = vmatmul.bf16.gmra.mxu0 %v619
    %v748 = vpop.f32.mrf.mxu0
    %v749 = vadd.f32 0.0, %v748
    %v750 = vpop.f32.mrf.mxu0
    %v751 = vadd.f32 0.0, %v750
    %752 = vmatmul.bf16.gmra.mxu0 %v620
    %v753 = vpop.f32.mrf.mxu0
    %v754 = vadd.f32 0.0, %v753
    %v755 = vpop.f32.mrf.mxu0
    %v756 = vadd.f32 0.0, %v755
    %757 = vmatmul.bf16.gmra.mxu0 %v621
    %v758 = vpop.f32.mrf.mxu0
    %v759 = vadd.f32 0.0, %v758
    %v760 = vpop.f32.mrf.mxu0
    %v761 = vadd.f32 0.0, %v760
    %762 = vdwg.mxu0
    %v763 = vadd.f32 %v537, %v701
    %v764 = vadd.f32 %v561, %v725
    %v765 = vadd.f32 %v585, %v749
    %v766 = vadd.f32 %v539, %v703
    %v767 = vadd.f32 %v563, %v727
    %v768 = vadd.f32 %v587, %v751
    %v769 = vadd.f32 %v542, %v706
    %v770 = vadd.f32 %v566, %v730
    %v771 = vadd.f32 %v590, %v754
    %v772 = vadd.f32 %v544, %v708
    %v773 = vadd.f32 %v568, %v732
    %v774 = vadd.f32 %v592, %v756
    %v775 = vadd.f32 %v547, %v711
    %v776 = vadd.f32 %v571, %v735
    %v777 = vadd.f32 %v595, %v759
    %v778 = vadd.f32 %v549, %v713
    %v779 = vadd.f32 %v573, %v737
    %v780 = vadd.f32 %v597, %v761
    %v781 = vld [vmem:[#allocation2 + $0x8] sm:$0xe]
    %v782 = vld [vmem:[#allocation2 + $0xc] sm:$0xf]
    %v783 = vld [vmem:[#allocation2 + $0x10] sm:$0xf]
    %v784 = vld [vmem:[#allocation2 + $0x14] sm:$0xf]
    %v785 = vld [vmem:[#allocation2 + $0x18] sm:$0xf]
    %v786 = vld [vmem:[#allocation2 + $0x1c] sm:$0xf]
    %v787 = vld [vmem:[#allocation2 + $0x20] sm:$0xf]
    %v788 = vld [vmem:[#allocation2 + $0x24] sm:$0xf]
    %v789 = vld [vmem:[#allocation2 + $0x28] sm:$0xf]
    %v790 = vld [vmem:[#allocation2 + $0x2c] sm:$0xf]
    %v791 = vld [vmem:[#allocation2 + $0x30] sm:$0xf]
    %v792 = vld [vmem:[#allocation2 + $0x34] sm:$0xf]
    %v793 = vld [vmem:[#allocation2 + $0x38] sm:$0xf]
    %v794 = vld [vmem:[#allocation2 + $0x3c] sm:$0xf]
    %v795 = vld [vmem:[#allocation2 + $0x40] sm:$0xf]
    %v796 = vld [vmem:[#allocation2 + $0x44] sm:$0xf]
    %v797 = vld [vmem:[#allocation2 + $0x48] sm:$0xf]
    %v798 = vld [vmem:[#allocation2 + $0x4c] sm:$0xf]
    %v799 = vld [vmem:[#allocation2 + $0x50] sm:$0xf]
    %v800 = vld [vmem:[#allocation2 + $0x54] sm:$0xf]
    %v801 = vld [vmem:[#allocation2 + $0x58] sm:$0xf]
    %v802 = vld [vmem:[#allocation2 + $0x5c] sm:$0xf]
    %v803 = vld [vmem:[#allocation2 + $0x60] sm:$0xf]
    %v804 = vld [vmem:[#allocation2 + $0x64] sm:$0xf]
    %v805 = vld [vmem:[#allocation2 + $0x68] sm:$0xf]
    %v806 = vld [vmem:[#allocation2 + $0x6c] sm:$0xf]
    %v807 = vld [vmem:[#allocation2 + $0x70] sm:$0xf]
    %v808 = vld [vmem:[#allocation2 + $0x74] sm:$0xf]
    %v809 = vld [vmem:[#allocation2 + $0x78] sm:$0xf]
    %v810 = vld [vmem:[#allocation2 + $0x7c] sm:$0xf]
    %v811 = vld [vmem:[#allocation2 + $0x80] sm:$0xf]
    %v812 = vld [vmem:[#allocation2 + $0x84] sm:$0xf]
    %v813 = vld [vmem:[#allocation2 + $0x88] sm:$0xf]
    %v814 = vld [vmem:[#allocation2 + $0x8c] sm:$0xf]
    %v815 = vld [vmem:[#allocation2 + $0x90] sm:$0xf]
    %v816 = vld [vmem:[#allocation2 + $0x94] sm:$0xf]
    %v817 = vld [vmem:[#allocation2 + $0x98] sm:$0xf]
    %v818 = vld [vmem:[#allocation2 + $0x9c] sm:$0xf]
    %v819 = vld [vmem:[#allocation2 + $0xa0] sm:$0xf]
    %v820 = vld [vmem:[#allocation2 + $0xa4] sm:$0xf]
    %v821 = vld [vmem:[#allocation2 + $0xa8] sm:$0x7]
    %s822 = scalar_lea.vmem [#allocation5], 72
    %v823 = vld [vmem:[%s822] sm:$0xf]
    %v824 = vld [vmem:[%s822 + $0x4] sm:$0xf]
    %v825 = vld [vmem:[%s822 + $0x8] sm:$0xf]
    %v826 = vld [vmem:[%s822 + $0xc] sm:$0xf]
    %v827 = vld [vmem:[%s822 + $0x10] sm:$0xf]
    %v828 = vld [vmem:[%s822 + $0x14] sm:$0xf]
    %v835 = vunpack.c.l.b16 %v823
    %v836 = vunpack.c.l.b16 %v824
    %v837 = vunpack.c.l.b16 %v825
    %v838 = vunpack.c.l.b16 %v826
    %v839 = vunpack.c.l.b16 %v827
    %v840 = vunpack.c.l.b16 %v828
    %v841 = vpack.c.b16 %v836, %v835
    %v842 = vpack.c.b16 %v838, %v837
    %v843 = vpack.c.b16 %v840, %v839
    %v888 = vunpack.c.l.b16 %v781
    %v889 = vunpack.c.l.b16 %v782
    %v890 = vunpack.c.l.b16 %v783
    %v891 = vunpack.c.l.b16 %v784
    %v892 = vunpack.c.l.b16 %v785
    %v893 = vunpack.c.l.b16 %v786
    %v894 = vunpack.c.l.b16 %v787
    %v895 = vunpack.c.l.b16 %v788
    %v896 = vunpack.c.l.b16 %v789
    %v897 = vunpack.c.l.b16 %v790
    %v898 = vunpack.c.l.b16 %v791
    %v899 = vunpack.c.l.b16 %v792
    %v900 = vunpack.c.l.b16 %v793
    %v901 = vunpack.c.l.b16 %v794
    %v902 = vunpack.c.l.b16 %v795
    %v903 = vunpack.c.l.b16 %v796
    %v904 = vunpack.c.l.b16 %v797
    %v905 = vunpack.c.l.b16 %v798
    %v906 = vunpack.c.l.b16 %v799
    %v907 = vunpack.c.l.b16 %v800
    %v908 = vunpack.c.l.b16 %v801
    %v909 = vunpack.c.l.b16 %v802
    %v910 = vunpack.c.l.b16 %v803
    %v911 = vunpack.c.l.b16 %v804
    %v912 = vunpack.c.l.b16 %v805
    %v913 = vunpack.c.l.b16 %v806
    %v914 = vunpack.c.l.b16 %v807
    %v915 = vunpack.c.l.b16 %v808
    %v916 = vunpack.c.l.b16 %v809
    %v917 = vunpack.c.l.b16 %v810
    %v918 = vunpack.c.l.b16 %v811
    %v919 = vunpack.c.l.b16 %v812
    %v920 = vunpack.c.l.b16 %v813
    %v921 = vunpack.c.l.b16 %v814
    %v922 = vunpack.c.l.b16 %v815
    %v923 = vunpack.c.l.b16 %v816
    %v924 = vunpack.c.l.b16 %v817
    %v925 = vunpack.c.l.b16 %v818
    %v926 = vunpack.c.l.b16 %v819
    %v927 = vunpack.c.l.b16 %v820
    %v928 = vunpack.c.l.b16 %v821
    %v929 = vpack.c.b16 %v889, %v888
    %v930 = vpack.c.b16 %v891, %v890
    %v931 = vpack.c.b16 %v893, %v892
    %v932 = vpack.c.b16 %v895, %v894
    %v933 = vpack.c.b16 %v897, %v896
    %v934 = vpack.c.b16 %v899, %v898
    %v935 = vpack.c.b16 %v901, %v900
    %v936 = vpack.c.b16 %v903, %v902
    %v937 = vpack.c.b16 %v905, %v904
    %v938 = vpack.c.b16 %v907, %v906
    %v939 = vpack.c.b16 %v909, %v908
    %v940 = vpack.c.b16 %v911, %v910
    %v941 = vpack.c.b16 %v913, %v912
    %v942 = vpack.c.b16 %v915, %v914
    %v943 = vpack.c.b16 %v917, %v916
    %v944 = vpack.c.b16 %v919, %v918
    %v945 = vpack.c.b16 %v921, %v920
    %v946 = vpack.c.b16 %v923, %v922
    %v947 = vpack.c.b16 %v925, %v924
    %v948 = vpack.c.b16 %v927, %v926
    %v949 = vpack.c.b16 %v928, %v928
    %v950 = vrot.slane %v929, 1
    %v951 = vrot.slane %v930, 1
    %v952 = vsel %vm628, %v950, %v951
    %v953 = vrot.slane %v931, 1
    %v954 = vsel %vm628, %v951, %v953
    %v955 = vrot.slane %v932, 1
    %v956 = vsel %vm628, %v953, %v955
    %v957 = vrot.slane %v933, 1
    %v958 = vsel %vm628, %v955, %v957
    %v959 = vrot.slane %v934, 1
    %v960 = vsel %vm628, %v957, %v959
    %v961 = vrot.slane %v935, 1
    %v962 = vsel %vm628, %v959, %v961
    %v963 = vrot.slane %v936, 1
    %v964 = vsel %vm628, %v961, %v963
    %v965 = vrot.slane %v937, 1
    %v966 = vsel %vm628, %v963, %v965
    %v967 = vrot.slane %v938, 1
    %v968 = vsel %vm628, %v965, %v967
    %v969 = vrot.slane %v939, 1
    %v970 = vsel %vm628, %v967, %v969
    %v971 = vrot.slane %v940, 1
    %v972 = vsel %vm628, %v969, %v971
    %v973 = vrot.slane %v941, 1
    %v974 = vsel %vm628, %v971, %v973
    %v975 = vrot.slane %v942, 1
    %v976 = vsel %vm628, %v973, %v975
    %v977 = vrot.slane %v943, 1
    %v978 = vsel %vm628, %v975, %v977
    %v979 = vrot.slane %v944, 1
    %v980 = vsel %vm628, %v977, %v979
    %v981 = vrot.slane %v945, 1
    %v982 = vsel %vm628, %v979, %v981
    %v983 = vrot.slane %v946, 1
    %v984 = vsel %vm628, %v981, %v983
    %v985 = vrot.slane %v947, 1
    %v986 = vsel %vm628, %v983, %v985
    %v987 = vrot.slane %v948, 1
    %v988 = vsel %vm628, %v985, %v987
    %v989 = vrot.slane %v949, 1
    %v990 = vsel %vm628, %v987, %v989
    %1012 = vmatpush.bf16.xpose.msra.mxu0 %v966
    %1013 = vmatpush.bf16.xpose.msra.mxu0 %v964
    %1014 = vmatpush.bf16.xpose.msra.mxu0 %v962
    %1015 = vmatpush.bf16.xpose.msra.mxu0 %v960
    %1016 = vmatpush.bf16.xpose.msra.mxu0 %v958
    %1017 = vmatpush.bf16.xpose.msra.mxu0 %v956
    %1018 = vmatpush.bf16.xpose.msra.mxu0 %v954
    %1019 = vmatpush.bf16.xpose.msra.mxu0 %v952
    %1020 = vmatmul.bf16.gmra.mxu0 %v841
    %v1021 = vpop.f32.mrf.mxu0
    %v1022 = vadd.f32 0.0, %v1021
    %v1023 = vpop.f32.mrf.mxu0
    %v1024 = vadd.f32 0.0, %v1023
    %1025 = vmatmul.bf16.gmra.mxu0 %v842
    %v1026 = vpop.f32.mrf.mxu0
    %v1027 = vadd.f32 0.0, %v1026
    %v1028 = vpop.f32.mrf.mxu0
    %v1029 = vadd.f32 0.0, %v1028
    %1030 = vmatmul.bf16.gmra.mxu0 %v843
    %v1031 = vpop.f32.mrf.mxu0
    %v1032 = vadd.f32 0.0, %v1031
    %v1033 = vpop.f32.mrf.mxu0
    %v1034 = vadd.f32 0.0, %v1033
    %1035 = vdwg.mxu0
    %1036 = vmatpush.bf16.xpose.msra.mxu0 %v982
    %1037 = vmatpush.bf16.xpose.msra.mxu0 %v980
    %1038 = vmatpush.bf16.xpose.msra.mxu0 %v978
    %1039 = vmatpush.bf16.xpose.msra.mxu0 %v976
    %1040 = vmatpush.bf16.xpose.msra.mxu0 %v974
    %1041 = vmatpush.bf16.xpose.msra.mxu0 %v972
    %1042 = vmatpush.bf16.xpose.msra.mxu0 %v970
    %1043 = vmatpush.bf16.xpose.msra.mxu0 %v968
    %1044 = vmatmul.bf16.gmra.mxu0 %v841
    %v1045 = vpop.f32.mrf.mxu0
    %v1046 = vadd.f32 0.0, %v1045
    %v1047 = vpop.f32.mrf.mxu0
    %v1048 = vadd.f32 0.0, %v1047
    %1049 = vmatmul.bf16.gmra.mxu0 %v842
    %v1050 = vpop.f32.mrf.mxu0
    %v1051 = vadd.f32 0.0, %v1050
    %v1052 = vpop.f32.mrf.mxu0
    %v1053 = vadd.f32 0.0, %v1052
    %1054 = vmatmul.bf16.gmra.mxu0 %v843
    %v1055 = vpop.f32.mrf.mxu0
    %v1056 = vadd.f32 0.0, %v1055
    %v1057 = vpop.f32.mrf.mxu0
    %v1058 = vadd.f32 0.0, %v1057
    %1059 = vdwg.mxu0
    %1060 = vmatpush.bf16.xpose.msra.mxu0 0
    %1061 = vmatpush.bf16.xpose.msra.mxu0 0
    %1062 = vmatpush.bf16.xpose.msra.mxu0 0
    %1063 = vmatpush.bf16.xpose.msra.mxu0 %v989
    %1064 = vmatpush.bf16.xpose.msra.mxu0 %v990
    %1065 = vmatpush.bf16.xpose.msra.mxu0 %v988
    %1066 = vmatpush.bf16.xpose.msra.mxu0 %v986
    %1067 = vmatpush.bf16.xpose.msra.mxu0 %v984
    %1068 = vmatmul.bf16.gmra.mxu0 %v841
    %v1069 = vpop.f32.mrf.mxu0
    %v1070 = vadd.f32 0.0, %v1069
    %v1071 = vpop.f32.mrf.mxu0
    %v1072 = vadd.f32 0.0, %v1071
    %1073 = vmatmul.bf16.gmra.mxu0 %v842
    %v1074 = vpop.f32.mrf.mxu0
    %v1075 = vadd.f32 0.0, %v1074
    %v1076 = vpop.f32.mrf.mxu0
    %v1077 = vadd.f32 0.0, %v1076
    %1078 = vmatmul.bf16.gmra.mxu0 %v843
    %v1079 = vpop.f32.mrf.mxu0
    %v1080 = vadd.f32 0.0, %v1079
    %v1081 = vpop.f32.mrf.mxu0
    %v1082 = vadd.f32 0.0, %v1081
    %1083 = vdwg.mxu0
    %v1084 = vadd.f32 %v763, %v1022
    %v1085 = vadd.f32 %v764, %v1046
    %v1086 = vadd.f32 %v765, %v1070
    %v1087 = vadd.f32 %v766, %v1024
    %v1088 = vadd.f32 %v767, %v1048
    %v1089 = vadd.f32 %v768, %v1072
    %v1090 = vadd.f32 %v769, %v1027
    %v1091 = vadd.f32 %v770, %v1051
    %v1092 = vadd.f32 %v771, %v1075
    %v1093 = vadd.f32 %v772, %v1029
    %v1094 = vadd.f32 %v773, %v1053
    %v1095 = vadd.f32 %v774, %v1077
    %v1096 = vadd.f32 %v775, %v1032
    %v1097 = vadd.f32 %v776, %v1056
    %v1098 = vadd.f32 %v777, %v1080
    %v1099 = vadd.f32 %v778, %v1034
    %v1100 = vadd.f32 %v779, %v1058
    %v1101 = vadd.f32 %v780, %v1082
    %v1102 = vld [vmem:[#allocation2 + $0xa8] sm:$0xf]
    %s1103 = scalar_lea.vmem [#allocation5], 96
    %v1104 = vld [vmem:[%s1103] sm:$0xf]
    %v1105 = vld [vmem:[%s1103 + $0x4] sm:$0xf]
    %v1106 = vld [vmem:[%s1103 + $0x8] sm:$0xf]
    %v1107 = vld [vmem:[%s1103 + $0xc] sm:$0xf]
    %v1108 = vld [vmem:[%s1103 + $0x10] sm:$0xf]
    %v1109 = vld [vmem:[%s1103 + $0x14] sm:$0xf]
    %v1116 = vunpack.c.l.b16 %v1104
    %v1117 = vunpack.c.l.b16 %v1105
    %v1118 = vunpack.c.l.b16 %v1106
    %v1119 = vunpack.c.l.b16 %v1107
    %v1120 = vunpack.c.l.b16 %v1108
    %v1121 = vunpack.c.l.b16 %v1109
    %v1122 = vpack.c.b16 %v1117, %v1116
    %v1123 = vpack.c.b16 %v1119, %v1118
    %v1124 = vpack.c.b16 %v1121, %v1120
    %v1129 = vunpack.c.l.b16 %v1102
    %v1130 = vpack.c.b16 %v1129, %v1129
    %vm1131 = vsmask.f32 6400
    %v1133 = vshrl.u32 %v929, 16
    %v1135 = vrot.slane %v1133, 1
    %v1136 = vshll.u32 %v929, 16
    %v1138 = vrot.slane %v1136, 2
    %v1139 = vor.u32 %v1135, %v1138
    %v1141 = vshrl.u32 %v930, 16
    %v1143 = vrot.slane %v1141, 1
    %v1144 = vshll.u32 %v930, 16
    %v1146 = vrot.slane %v1144, 2
    %v1147 = vor.u32 %v1143, %v1146
    %v1148 = vsel %vm1131, %v1139, %v1147
    %v1150 = vshrl.u32 %v931, 16
    %v1152 = vrot.slane %v1150, 1
    %v1153 = vshll.u32 %v931, 16
    %v1155 = vrot.slane %v1153, 2
    %v1156 = vor.u32 %v1152, %v1155
    %v1157 = vsel %vm1131, %v1147, %v1156
    %v1159 = vshrl.u32 %v932, 16
    %v1161 = vrot.slane %v1159, 1
    %v1162 = vshll.u32 %v932, 16
    %v1164 = vrot.slane %v1162, 2
    %v1165 = vor.u32 %v1161, %v1164
    %v1166 = vsel %vm1131, %v1156, %v1165
    %v1168 = vshrl.u32 %v933, 16
    %v1170 = vrot.slane %v1168, 1
    %v1171 = vshll.u32 %v933, 16
    %v1173 = vrot.slane %v1171, 2
    %v1174 = vor.u32 %v1170, %v1173
    %v1175 = vsel %vm1131, %v1165, %v1174
    %v1177 = vshrl.u32 %v934, 16
    %v1179 = vrot.slane %v1177, 1
    %v1180 = vshll.u32 %v934, 16
    %v1182 = vrot.slane %v1180, 2
    %v1183 = vor.u32 %v1179, %v1182
    %v1184 = vsel %vm1131, %v1174, %v1183
    %v1186 = vshrl.u32 %v935, 16
    %v1188 = vrot.slane %v1186, 1
    %v1189 = vshll.u32 %v935, 16
    %v1191 = vrot.slane %v1189, 2
    %v1192 = vor.u32 %v1188, %v1191
    %v1193 = vsel %vm1131, %v1183, %v1192
    %v1195 = vshrl.u32 %v936, 16
    %v1197 = vrot.slane %v1195, 1
    %v1198 = vshll.u32 %v936, 16
    %v1200 = vrot.slane %v1198, 2
    %v1201 = vor.u32 %v1197, %v1200
    %v1202 = vsel %vm1131, %v1192, %v1201
    %v1204 = vshrl.u32 %v937, 16
    %v1206 = vrot.slane %v1204, 1
    %v1207 = vshll.u32 %v937, 16
    %v1209 = vrot.slane %v1207, 2
    %v1210 = vor.u32 %v1206, %v1209
    %v1211 = vsel %vm1131, %v1201, %v1210
    %v1213 = vshrl.u32 %v938, 16
    %v1215 = vrot.slane %v1213, 1
    %v1216 = vshll.u32 %v938, 16
    %v1218 = vrot.slane %v1216, 2
    %v1219 = vor.u32 %v1215, %v1218
    %v1220 = vsel %vm1131, %v1210, %v1219
    %v1222 = vshrl.u32 %v939, 16
    %v1224 = vrot.slane %v1222, 1
    %v1225 = vshll.u32 %v939, 16
    %v1227 = vrot.slane %v1225, 2
    %v1228 = vor.u32 %v1224, %v1227
    %v1229 = vsel %vm1131, %v1219, %v1228
    %v1231 = vshrl.u32 %v940, 16
    %v1233 = vrot.slane %v1231, 1
    %v1234 = vshll.u32 %v940, 16
    %v1236 = vrot.slane %v1234, 2
    %v1237 = vor.u32 %v1233, %v1236
    %v1238 = vsel %vm1131, %v1228, %v1237
    %v1240 = vshrl.u32 %v941, 16
    %v1242 = vrot.slane %v1240, 1
    %v1243 = vshll.u32 %v941, 16
    %v1245 = vrot.slane %v1243, 2
    %v1246 = vor.u32 %v1242, %v1245
    %v1247 = vsel %vm1131, %v1237, %v1246
    %v1249 = vshrl.u32 %v942, 16
    %v1251 = vrot.slane %v1249, 1
    %v1252 = vshll.u32 %v942, 16
    %v1254 = vrot.slane %v1252, 2
    %v1255 = vor.u32 %v1251, %v1254
    %v1256 = vsel %vm1131, %v1246, %v1255
    %v1258 = vshrl.u32 %v943, 16
    %v1260 = vrot.slane %v1258, 1
    %v1261 = vshll.u32 %v943, 16
    %v1263 = vrot.slane %v1261, 2
    %v1264 = vor.u32 %v1260, %v1263
    %v1265 = vsel %vm1131, %v1255, %v1264
    %v1267 = vshrl.u32 %v944, 16
    %v1269 = vrot.slane %v1267, 1
    %v1270 = vshll.u32 %v944, 16
    %v1272 = vrot.slane %v1270, 2
    %v1273 = vor.u32 %v1269, %v1272
    %v1274 = vsel %vm1131, %v1264, %v1273
    %v1276 = vshrl.u32 %v945, 16
    %v1278 = vrot.slane %v1276, 1
    %v1279 = vshll.u32 %v945, 16
    %v1281 = vrot.slane %v1279, 2
    %v1282 = vor.u32 %v1278, %v1281
    %v1283 = vsel %vm1131, %v1273, %v1282
    %v1285 = vshrl.u32 %v946, 16
    %v1287 = vrot.slane %v1285, 1
    %v1288 = vshll.u32 %v946, 16
    %v1290 = vrot.slane %v1288, 2
    %v1291 = vor.u32 %v1287, %v1290
    %v1292 = vsel %vm1131, %v1282, %v1291
    %v1294 = vshrl.u32 %v947, 16
    %v1296 = vrot.slane %v1294, 1
    %v1297 = vshll.u32 %v947, 16
    %v1299 = vrot.slane %v1297, 2
    %v1300 = vor.u32 %v1296, %v1299
    %v1301 = vsel %vm1131, %v1291, %v1300
    %v1303 = vshrl.u32 %v948, 16
    %v1305 = vrot.slane %v1303, 1
    %v1306 = vshll.u32 %v948, 16
    %v1308 = vrot.slane %v1306, 2
    %v1309 = vor.u32 %v1305, %v1308
    %v1310 = vsel %vm1131, %v1300, %v1309
    %v1312 = vshrl.u32 %v1130, 16
    %v1314 = vrot.slane %v1312, 1
    %v1315 = vshll.u32 %v1130, 16
    %v1317 = vrot.slane %v1315, 2
    %v1318 = vor.u32 %v1314, %v1317
    %v1319 = vsel %vm1131, %v1309, %v1318
    %1341 = vmatpush.bf16.xpose.msra.mxu0 %v1211
    %1342 = vmatpush.bf16.xpose.msra.mxu0 %v1202
    %1343 = vmatpush.bf16.xpose.msra.mxu0 %v1193
    %1344 = vmatpush.bf16.xpose.msra.mxu0 %v1184
    %1345 = vmatpush.bf16.xpose.msra.mxu0 %v1175
    %1346 = vmatpush.bf16.xpose.msra.mxu0 %v1166
    %1347 = vmatpush.bf16.xpose.msra.mxu0 %v1157
    %1348 = vmatpush.bf16.xpose.msra.mxu0 %v1148
    %1349 = vmatmul.bf16.gmra.mxu0 %v1122
    %v1350 = vpop.f32.mrf.mxu0
    %v1351 = vadd.f32 0.0, %v1350
    %v1352 = vpop.f32.mrf.mxu0
    %v1353 = vadd.f32 0.0, %v1352
    %1354 = vmatmul.bf16.gmra.mxu0 %v1123
    %v1355 = vpop.f32.mrf.mxu0
    %v1356 = vadd.f32 0.0, %v1355
    %v1357 = vpop.f32.mrf.mxu0
    %v1358 = vadd.f32 0.0, %v1357
    %1359 = vmatmul.bf16.gmra.mxu0 %v1124
    %v1360 = vpop.f32.mrf.mxu0
    %v1361 = vadd.f32 0.0, %v1360
    %v1362 = vpop.f32.mrf.mxu0
    %v1363 = vadd.f32 0.0, %v1362
    %1364 = vdwg.mxu0
    %1365 = vmatpush.bf16.xpose.msra.mxu0 %v1283
    %1366 = vmatpush.bf16.xpose.msra.mxu0 %v1274
    %1367 = vmatpush.bf16.xpose.msra.mxu0 %v1265
    %1368 = vmatpush.bf16.xpose.msra.mxu0 %v1256
    %1369 = vmatpush.bf16.xpose.msra.mxu0 %v1247
    %1370 = vmatpush.bf16.xpose.msra.mxu0 %v1238
    %1371 = vmatpush.bf16.xpose.msra.mxu0 %v1229
    %1372 = vmatpush.bf16.xpose.msra.mxu0 %v1220
    %1373 = vmatmul.bf16.gmra.mxu0 %v1122
    %v1374 = vpop.f32.mrf.mxu0
    %v1375 = vadd.f32 0.0, %v1374
    %v1376 = vpop.f32.mrf.mxu0
    %v1377 = vadd.f32 0.0, %v1376
    %1378 = vmatmul.bf16.gmra.mxu0 %v1123
    %v1379 = vpop.f32.mrf.mxu0
    %v1380 = vadd.f32 0.0, %v1379
    %v1381 = vpop.f32.mrf.mxu0
    %v1382 = vadd.f32 0.0, %v1381
    %1383 = vmatmul.bf16.gmra.mxu0 %v1124
    %v1384 = vpop.f32.mrf.mxu0
    %v1385 = vadd.f32 0.0, %v1384
    %v1386 = vpop.f32.mrf.mxu0
    %v1387 = vadd.f32 0.0, %v1386
    %1388 = vdwg.mxu0
    %1389 = vmatpush.bf16.xpose.msra.mxu0 0
    %1390 = vmatpush.bf16.xpose.msra.mxu0 0
    %1391 = vmatpush.bf16.xpose.msra.mxu0 0
    %1392 = vmatpush.bf16.xpose.msra.mxu0 %v1318
    %1393 = vmatpush.bf16.xpose.msra.mxu0 %v1319
    %1394 = vmatpush.bf16.xpose.msra.mxu0 %v1310
    %1395 = vmatpush.bf16.xpose.msra.mxu0 %v1301
    %1396 = vmatpush.bf16.xpose.msra.mxu0 %v1292
    %1397 = vmatmul.bf16.gmra.mxu0 %v1122
    %v1398 = vpop.f32.mrf.mxu0
    %v1399 = vadd.f32 0.0, %v1398
    %v1400 = vpop.f32.mrf.mxu0
    %v1401 = vadd.f32 0.0, %v1400
    %1402 = vmatmul.bf16.gmra.mxu0 %v1123
    %v1403 = vpop.f32.mrf.mxu0
    %v1404 = vadd.f32 0.0, %v1403
    %v1405 = vpop.f32.mrf.mxu0
    %v1406 = vadd.f32 0.0, %v1405
    %1407 = vmatmul.bf16.gmra.mxu0 %v1124
    %v1408 = vpop.f32.mrf.mxu0
    %v1409 = vadd.f32 0.0, %v1408
    %v1410 = vpop.f32.mrf.mxu0
    %v1411 = vadd.f32 0.0, %v1410
    %1412 = vdwg.mxu0
    %v1413 = vadd.f32 %v1084, %v1351
    %v1414 = vadd.f32 %v1085, %v1375
    %v1415 = vadd.f32 %v1086, %v1399
    %v1416 = vadd.f32 %v1087, %v1353
    %v1417 = vadd.f32 %v1088, %v1377
    %v1418 = vadd.f32 %v1089, %v1401
    %v1419 = vadd.f32 %v1090, %v1356
    %v1420 = vadd.f32 %v1091, %v1380
    %v1421 = vadd.f32 %v1092, %v1404
    %v1422 = vadd.f32 %v1093, %v1358
    %v1423 = vadd.f32 %v1094, %v1382
    %v1424 = vadd.f32 %v1095, %v1406
    %v1425 = vadd.f32 %v1096, %v1361
    %v1426 = vadd.f32 %v1097, %v1385
    %v1427 = vadd.f32 %v1098, %v1409
    %v1428 = vadd.f32 %v1099, %v1363
    %v1429 = vadd.f32 %v1100, %v1387
    %v1430 = vadd.f32 %v1101, %v1411
    %v1431 = vld [vmem:[#allocation2 + $0x8] sm:$0xc]
    %s1432 = scalar_lea.vmem [#allocation5], 120
    %v1433 = vld [vmem:[%s1432] sm:$0xf]
    %v1434 = vld [vmem:[%s1432 + $0x4] sm:$0xf]
    %v1435 = vld [vmem:[%s1432 + $0x8] sm:$0xf]
    %v1436 = vld [vmem:[%s1432 + $0xc] sm:$0xf]
    %v1437 = vld [vmem:[%s1432 + $0x10] sm:$0xf]
    %v1438 = vld [vmem:[%s1432 + $0x14] sm:$0xf]
    %v1445 = vunpack.c.l.b16 %v1433
    %v1446 = vunpack.c.l.b16 %v1434
    %v1447 = vunpack.c.l.b16 %v1435
    %v1448 = vunpack.c.l.b16 %v1436
    %v1449 = vunpack.c.l.b16 %v1437
    %v1450 = vunpack.c.l.b16 %v1438
    %v1451 = vpack.c.b16 %v1446, %v1445
    %v1452 = vpack.c.b16 %v1448, %v1447
    %v1453 = vpack.c.b16 %v1450, %v1449
    %v1458 = vunpack.c.l.b16 %v1431
    %v1459 = vpack.c.b16 %v889, %v1458
    %vm1460 = vcmask 1045504
    %v1461 = vrot.slane %v1459, 2
    %v1462 = vrot.slane %v930, 2
    %v1463 = vsel %vm1460, %v1461, %v1462
    %v1464 = vrot.slane %v931, 2
    %v1465 = vsel %vm1460, %v1462, %v1464
    %v1466 = vrot.slane %v932, 2
    %v1467 = vsel %vm1460, %v1464, %v1466
    %v1468 = vrot.slane %v933, 2
    %v1469 = vsel %vm1460, %v1466, %v1468
    %v1470 = vrot.slane %v934, 2
    %v1471 = vsel %vm1460, %v1468, %v1470
    %v1472 = vrot.slane %v935, 2
    %v1473 = vsel %vm1460, %v1470, %v1472
    %v1474 = vrot.slane %v936, 2
    %v1475 = vsel %vm1460, %v1472, %v1474
    %v1476 = vrot.slane %v937, 2
    %v1477 = vsel %vm1460, %v1474, %v1476
    %v1478 = vrot.slane %v938, 2
    %v1479 = vsel %vm1460, %v1476, %v1478
    %v1480 = vrot.slane %v939, 2
    %v1481 = vsel %vm1460, %v1478, %v1480
    %v1482 = vrot.slane %v940, 2
    %v1483 = vsel %vm1460, %v1480, %v1482
    %v1484 = vrot.slane %v941, 2
    %v1485 = vsel %vm1460, %v1482, %v1484
    %v1486 = vrot.slane %v942, 2
    %v1487 = vsel %vm1460, %v1484, %v1486
    %v1488 = vrot.slane %v943, 2
    %v1489 = vsel %vm1460, %v1486, %v1488
    %v1490 = vrot.slane %v944, 2
    %v1491 = vsel %vm1460, %v1488, %v1490
    %v1492 = vrot.slane %v945, 2
    %v1493 = vsel %vm1460, %v1490, %v1492
    %v1494 = vrot.slane %v946, 2
    %v1495 = vsel %vm1460, %v1492, %v1494
    %v1496 = vrot.slane %v947, 2
    %v1497 = vsel %vm1460, %v1494, %v1496
    %v1498 = vrot.slane %v948, 2
    %v1499 = vsel %vm1460, %v1496, %v1498
    %v1500 = vrot.slane %v1130, 2
    %v1501 = vsel %vm1460, %v1498, %v1500
    %1523 = vmatpush.bf16.xpose.msra.mxu0 %v1477
    %1524 = vmatpush.bf16.xpose.msra.mxu0 %v1475
    %1525 = vmatpush.bf16.xpose.msra.mxu0 %v1473
    %1526 = vmatpush.bf16.xpose.msra.mxu0 %v1471
    %1527 = vmatpush.bf16.xpose.msra.mxu0 %v1469
    %1528 = vmatpush.bf16.xpose.msra.mxu0 %v1467
    %1529 = vmatpush.bf16.xpose.msra.mxu0 %v1465
    %1530 = vmatpush.bf16.xpose.msra.mxu0 %v1463
    %1531 = vmatmul.bf16.gmra.mxu0 %v1451
    %v1532 = vpop.f32.mrf.mxu0
    %v1533 = vadd.f32 0.0, %v1532
    %v1534 = vpop.f32.mrf.mxu0
    %v1535 = vadd.f32 0.0, %v1534
    %1536 = vmatmul.bf16.gmra.mxu0 %v1452
    %v1537 = vpop.f32.mrf.mxu0
    %v1538 = vadd.f32 0.0, %v1537
    %v1539 = vpop.f32.mrf.mxu0
    %v1540 = vadd.f32 0.0, %v1539
    %1541 = vmatmul.bf16.gmra.mxu0 %v1453
    %v1542 = vpop.f32.mrf.mxu0
    %v1543 = vadd.f32 0.0, %v1542
    %v1544 = vpop.f32.mrf.mxu0
    %v1545 = vadd.f32 0.0, %v1544
    %1546 = vdwg.mxu0
    %1547 = vmatpush.bf16.xpose.msra.mxu0 %v1493
    %1548 = vmatpush.bf16.xpose.msra.mxu0 %v1491
    %1549 = vmatpush.bf16.xpose.msra.mxu0 %v1489
    %1550 = vmatpush.bf16.xpose.msra.mxu0 %v1487
    %1551 = vmatpush.bf16.xpose.msra.mxu0 %v1485
    %1552 = vmatpush.bf16.xpose.msra.mxu0 %v1483
    %1553 = vmatpush.bf16.xpose.msra.mxu0 %v1481
    %1554 = vmatpush.bf16.xpose.msra.mxu0 %v1479
    %1555 = vmatmul.bf16.gmra.mxu0 %v1451
    %v1556 = vpop.f32.mrf.mxu0
    %v1557 = vadd.f32 0.0, %v1556
    %v1558 = vpop.f32.mrf.mxu0
    %v1559 = vadd.f32 0.0, %v1558
    %1560 = vmatmul.bf16.gmra.mxu0 %v1452
    %v1561 = vpop.f32.mrf.mxu0
    %v1562 = vadd.f32 0.0, %v1561
    %v1563 = vpop.f32.mrf.mxu0
    %v1564 = vadd.f32 0.0, %v1563
    %1565 = vmatmul.bf16.gmra.mxu0 %v1453
    %v1566 = vpop.f32.mrf.mxu0
    %v1567 = vadd.f32 0.0, %v1566
    %v1568 = vpop.f32.mrf.mxu0
    %v1569 = vadd.f32 0.0, %v1568
    %1570 = vdwg.mxu0
    %1571 = vmatpush.bf16.xpose.msra.mxu0 0
    %1572 = vmatpush.bf16.xpose.msra.mxu0 0
    %1573 = vmatpush.bf16.xpose.msra.mxu0 0
    %1574 = vmatpush.bf16.xpose.msra.mxu0 %v1500
    %1575 = vmatpush.bf16.xpose.msra.mxu0 %v1501
    %1576 = vmatpush.bf16.xpose.msra.mxu0 %v1499
    %1577 = vmatpush.bf16.xpose.msra.mxu0 %v1497
    %1578 = vmatpush.bf16.xpose.msra.mxu0 %v1495
    %1579 = vmatmul.bf16.gmra.mxu0 %v1451
    %v1580 = vpop.f32.mrf.mxu0
    %v1581 = vadd.f32 0.0, %v1580
    %v1582 = vpop.f32.mrf.mxu0
    %v1583 = vadd.f32 0.0, %v1582
    %1584 = vmatmul.bf16.gmra.mxu0 %v1452
    %v1585 = vpop.f32.mrf.mxu0
    %v1586 = vadd.f32 0.0, %v1585
    %v1587 = vpop.f32.mrf.mxu0
    %v1588 = vadd.f32 0.0, %v1587
    %1589 = vmatmul.bf16.gmra.mxu0 %v1453
    %v1590 = vpop.f32.mrf.mxu0
    %v1591 = vadd.f32 0.0, %v1590
    %v1592 = vpop.f32.mrf.mxu0
    %v1593 = vadd.f32 0.0, %v1592
    %1594 = vdwg.mxu0
    %v1595 = vadd.f32 %v1413, %v1533
    %v1596 = vadd.f32 %v1414, %v1557
    %v1597 = vadd.f32 %v1415, %v1581
    %v1598 = vadd.f32 %v1416, %v1535
    %v1599 = vadd.f32 %v1417, %v1559
    %v1600 = vadd.f32 %v1418, %v1583
    %v1601 = vadd.f32 %v1419, %v1538
    %v1602 = vadd.f32 %v1420, %v1562
    %v1603 = vadd.f32 %v1421, %v1586
    %v1604 = vadd.f32 %v1422, %v1540
    %v1605 = vadd.f32 %v1423, %v1564
    %v1606 = vadd.f32 %v1424, %v1588
    %v1607 = vadd.f32 %v1425, %v1543
    %v1608 = vadd.f32 %v1426, %v1567
    %v1609 = vadd.f32 %v1427, %v1591
    %v1610 = vadd.f32 %v1428, %v1545
    %v1611 = vadd.f32 %v1429, %v1569
    %v1612 = vadd.f32 %v1430, %v1593
    %v1613 = vld [vmem:[#allocation2 + $0x10] sm:$0xc]
    %v1614 = vld [vmem:[#allocation2 + $0x14] sm:$0xf]
    %v1615 = vld [vmem:[#allocation2 + $0x18] sm:$0xf]
    %v1616 = vld [vmem:[#allocation2 + $0x1c] sm:$0xf]
    %v1617 = vld [vmem:[#allocation2 + $0x20] sm:$0xf]
    %v1618 = vld [vmem:[#allocation2 + $0x24] sm:$0xf]
    %v1619 = vld [vmem:[#allocation2 + $0x28] sm:$0xf]
    %v1620 = vld [vmem:[#allocation2 + $0x2c] sm:$0xf]
    %v1621 = vld [vmem:[#allocation2 + $0x30] sm:$0xf]
    %v1622 = vld [vmem:[#allocation2 + $0x34] sm:$0xf]
    %v1623 = vld [vmem:[#allocation2 + $0x38] sm:$0xf]
    %v1624 = vld [vmem:[#allocation2 + $0x3c] sm:$0xf]
    %v1625 = vld [vmem:[#allocation2 + $0x40] sm:$0xf]
    %v1626 = vld [vmem:[#allocation2 + $0x44] sm:$0xf]
    %v1627 = vld [vmem:[#allocation2 + $0x48] sm:$0xf]
    %v1628 = vld [vmem:[#allocation2 + $0x4c] sm:$0xf]
    %v1629 = vld [vmem:[#allocation2 + $0x50] sm:$0xf]
    %v1630 = vld [vmem:[#allocation2 + $0x54] sm:$0xf]
    %v1631 = vld [vmem:[#allocation2 + $0x58] sm:$0xf]
    %v1632 = vld [vmem:[#allocation2 + $0x5c] sm:$0xf]
    %v1633 = vld [vmem:[#allocation2 + $0x60] sm:$0xf]
    %v1634 = vld [vmem:[#allocation2 + $0x64] sm:$0xf]
    %v1635 = vld [vmem:[#allocation2 + $0x68] sm:$0xf]
    %v1636 = vld [vmem:[#allocation2 + $0x6c] sm:$0xf]
    %v1637 = vld [vmem:[#allocation2 + $0x70] sm:$0xf]
    %v1638 = vld [vmem:[#allocation2 + $0x74] sm:$0xf]
    %v1639 = vld [vmem:[#allocation2 + $0x78] sm:$0xf]
    %v1640 = vld [vmem:[#allocation2 + $0x7c] sm:$0xf]
    %v1641 = vld [vmem:[#allocation2 + $0x80] sm:$0xf]
    %v1642 = vld [vmem:[#allocation2 + $0x84] sm:$0xf]
    %v1643 = vld [vmem:[#allocation2 + $0x88] sm:$0xf]
    %v1644 = vld [vmem:[#allocation2 + $0x8c] sm:$0xf]
    %v1645 = vld [vmem:[#allocation2 + $0x90] sm:$0xf]
    %v1646 = vld [vmem:[#allocation2 + $0x94] sm:$0xf]
    %v1647 = vld [vmem:[#allocation2 + $0x98] sm:$0xf]
    %v1648 = vld [vmem:[#allocation2 + $0x9c] sm:$0xf]
    %v1649 = vld [vmem:[#allocation2 + $0xa0] sm:$0xf]
    %v1650 = vld [vmem:[#allocation2 + $0xa4] sm:$0xf]
    %v1651 = vld [vmem:[#allocation2 + $0xa8] sm:$0xf]
    %v1652 = vld [vmem:[#allocation2 + $0xac] sm:$0xf]
    %v1653 = vld [vmem:[#allocation2 + $0xb0] sm:$0xf]
    %s1654 = scalar_lea.vmem [#allocation5], 144
    %v1655 = vld [vmem:[%s1654] sm:$0xf]
    %v1656 = vld [vmem:[%s1654 + $0x4] sm:$0xf]
    %v1657 = vld [vmem:[%s1654 + $0x8] sm:$0xf]
    %v1658 = vld [vmem:[%s1654 + $0xc] sm:$0xf]
    %v1659 = vld [vmem:[%s1654 + $0x10] sm:$0xf]
    %v1660 = vld [vmem:[%s1654 + $0x14] sm:$0xf]
    %v1667 = vunpack.c.l.b16 %v1655
    %v1668 = vunpack.c.l.b16 %v1656
    %v1669 = vunpack.c.l.b16 %v1657
    %v1670 = vunpack.c.l.b16 %v1658
    %v1671 = vunpack.c.l.b16 %v1659
    %v1672 = vunpack.c.l.b16 %v1660
    %v1673 = vpack.c.b16 %v1668, %v1667
    %v1674 = vpack.c.b16 %v1670, %v1669
    %v1675 = vpack.c.b16 %v1672, %v1671
    %v1720 = vunpack.c.l.b16 %v1613
    %v1721 = vunpack.c.l.b16 %v1614
    %v1722 = vunpack.c.l.b16 %v1615
    %v1723 = vunpack.c.l.b16 %v1616
    %v1724 = vunpack.c.l.b16 %v1617
    %v1725 = vunpack.c.l.b16 %v1618
    %v1726 = vunpack.c.l.b16 %v1619
    %v1727 = vunpack.c.l.b16 %v1620
    %v1728 = vunpack.c.l.b16 %v1621
    %v1729 = vunpack.c.l.b16 %v1622
    %v1730 = vunpack.c.l.b16 %v1623
    %v1731 = vunpack.c.l.b16 %v1624
    %v1732 = vunpack.c.l.b16 %v1625
    %v1733 = vunpack.c.l.b16 %v1626
    %v1734 = vunpack.c.l.b16 %v1627
    %v1735 = vunpack.c.l.b16 %v1628
    %v1736 = vunpack.c.l.b16 %v1629
    %v1737 = vunpack.c.l.b16 %v1630
    %v1738 = vunpack.c.l.b16 %v1631
    %v1739 = vunpack.c.l.b16 %v1632
    %v1740 = vunpack.c.l.b16 %v1633
    %v1741 = vunpack.c.l.b16 %v1634
    %v1742 = vunpack.c.l.b16 %v1635
    %v1743 = vunpack.c.l.b16 %v1636
    %v1744 = vunpack.c.l.b16 %v1637
    %v1745 = vunpack.c.l.b16 %v1638
    %v1746 = vunpack.c.l.b16 %v1639
    %v1747 = vunpack.c.l.b16 %v1640
    %v1748 = vunpack.c.l.b16 %v1641
    %v1749 = vunpack.c.l.b16 %v1642
    %v1750 = vunpack.c.l.b16 %v1643
    %v1751 = vunpack.c.l.b16 %v1644
    %v1752 = vunpack.c.l.b16 %v1645
    %v1753 = vunpack.c.l.b16 %v1646
    %v1754 = vunpack.c.l.b16 %v1647
    %v1755 = vunpack.c.l.b16 %v1648
    %v1756 = vunpack.c.l.b16 %v1649
    %v1757 = vunpack.c.l.b16 %v1650
    %v1758 = vunpack.c.l.b16 %v1651
    %v1759 = vunpack.c.l.b16 %v1652
    %v1760 = vunpack.c.l.b16 %v1653
    %v1761 = vpack.c.b16 %v1721, %v1720
    %v1762 = vpack.c.b16 %v1723, %v1722
    %v1763 = vpack.c.b16 %v1725, %v1724
    %v1764 = vpack.c.b16 %v1727, %v1726
    %v1765 = vpack.c.b16 %v1729, %v1728
    %v1766 = vpack.c.b16 %v1731, %v1730
    %v1767 = vpack.c.b16 %v1733, %v1732
    %v1768 = vpack.c.b16 %v1735, %v1734
    %v1769 = vpack.c.b16 %v1737, %v1736
    %v1770 = vpack.c.b16 %v1739, %v1738
    %v1771 = vpack.c.b16 %v1741, %v1740
    %v1772 = vpack.c.b16 %v1743, %v1742
    %v1773 = vpack.c.b16 %v1745, %v1744
    %v1774 = vpack.c.b16 %v1747, %v1746
    %v1775 = vpack.c.b16 %v1749, %v1748
    %v1776 = vpack.c.b16 %v1751, %v1750
    %v1777 = vpack.c.b16 %v1753, %v1752
    %v1778 = vpack.c.b16 %v1755, %v1754
    %v1779 = vpack.c.b16 %v1757, %v1756
    %v1780 = vpack.c.b16 %v1759, %v1758
    %v1781 = vpack.c.b16 %v1760, %v1760
    %v1782 = vrot.slane %v1761, 2
    %v1783 = vrot.slane %v1762, 2
    %v1784 = vsel %vm1460, %v1782, %v1783
    %v1785 = vrot.slane %v1763, 2
    %v1786 = vsel %vm1460, %v1783, %v1785
    %v1787 = vrot.slane %v1764, 2
    %v1788 = vsel %vm1460, %v1785, %v1787
    %v1789 = vrot.slane %v1765, 2
    %v1790 = vsel %vm1460, %v1787, %v1789
    %v1791 = vrot.slane %v1766, 2
    %v1792 = vsel %vm1460, %v1789, %v1791
    %v1793 = vrot.slane %v1767, 2
    %v1794 = vsel %vm1460, %v1791, %v1793
    %v1795 = vrot.slane %v1768, 2
    %v1796 = vsel %vm1460, %v1793, %v1795
    %v1797 = vrot.slane %v1769, 2
    %v1798 = vsel %vm1460, %v1795, %v1797
    %v1799 = vrot.slane %v1770, 2
    %v1800 = vsel %vm1460, %v1797, %v1799
    %v1801 = vrot.slane %v1771, 2
    %v1802 = vsel %vm1460, %v1799, %v1801
    %v1803 = vrot.slane %v1772, 2
    %v1804 = vsel %vm1460, %v1801, %v1803
    %v1805 = vrot.slane %v1773, 2
    %v1806 = vsel %vm1460, %v1803, %v1805
    %v1807 = vrot.slane %v1774, 2
    %v1808 = vsel %vm1460, %v1805, %v1807
    %v1809 = vrot.slane %v1775, 2
    %v1810 = vsel %vm1460, %v1807, %v1809
    %v1811 = vrot.slane %v1776, 2
    %v1812 = vsel %vm1460, %v1809, %v1811
    %v1813 = vrot.slane %v1777, 2
    %v1814 = vsel %vm1460, %v1811, %v1813
    %v1815 = vrot.slane %v1778, 2
    %v1816 = vsel %vm1460, %v1813, %v1815
    %v1817 = vrot.slane %v1779, 2
    %v1818 = vsel %vm1460, %v1815, %v1817
    %v1819 = vrot.slane %v1780, 2
    %v1820 = vsel %vm1460, %v1817, %v1819
    %v1821 = vrot.slane %v1781, 2
    %v1822 = vsel %vm1460, %v1819, %v1821
    %1844 = vmatpush.bf16.xpose.msra.mxu0 %v1798
    %1845 = vmatpush.bf16.xpose.msra.mxu0 %v1796
    %1846 = vmatpush.bf16.xpose.msra.mxu0 %v1794
    %1847 = vmatpush.bf16.xpose.msra.mxu0 %v1792
    %1848 = vmatpush.bf16.xpose.msra.mxu0 %v1790
    %1849 = vmatpush.bf16.xpose.msra.mxu0 %v1788
    %1850 = vmatpush.bf16.xpose.msra.mxu0 %v1786
    %1851 = vmatpush.bf16.xpose.msra.mxu0 %v1784
    %1852 = vmatmul.bf16.gmra.mxu0 %v1673
    %v1853 = vpop.f32.mrf.mxu0
    %v1854 = vadd.f32 0.0, %v1853
    %v1855 = vpop.f32.mrf.mxu0
    %v1856 = vadd.f32 0.0, %v1855
    %1857 = vmatmul.bf16.gmra.mxu0 %v1674
    %v1858 = vpop.f32.mrf.mxu0
    %v1859 = vadd.f32 0.0, %v1858
    %v1860 = vpop.f32.mrf.mxu0
    %v1861 = vadd.f32 0.0, %v1860
    %1862 = vmatmul.bf16.gmra.mxu0 %v1675
    %v1863 = vpop.f32.mrf.mxu0
    %v1864 = vadd.f32 0.0, %v1863
    %v1865 = vpop.f32.mrf.mxu0
    %v1866 = vadd.f32 0.0, %v1865
    %1867 = vdwg.mxu0
    %1868 = vmatpush.bf16.xpose.msra.mxu0 %v1814
    %1869 = vmatpush.bf16.xpose.msra.mxu0 %v1812
    %1870 = vmatpush.bf16.xpose.msra.mxu0 %v1810
    %1871 = vmatpush.bf16.xpose.msra.mxu0 %v1808
    %1872 = vmatpush.bf16.xpose.msra.mxu0 %v1806
    %1873 = vmatpush.bf16.xpose.msra.mxu0 %v1804
    %1874 = vmatpush.bf16.xpose.msra.mxu0 %v1802
    %1875 = vmatpush.bf16.xpose.msra.mxu0 %v1800
    %1876 = vmatmul.bf16.gmra.mxu0 %v1673
    %v1877 = vpop.f32.mrf.mxu0
    %v1878 = vadd.f32 0.0, %v1877
    %v1879 = vpop.f32.mrf.mxu0
    %v1880 = vadd.f32 0.0, %v1879
    %1881 = vmatmul.bf16.gmra.mxu0 %v1674
    %v1882 = vpop.f32.mrf.mxu0
    %v1883 = vadd.f32 0.0, %v1882
    %v1884 = vpop.f32.mrf.mxu0
    %v1885 = vadd.f32 0.0, %v1884
    %1886 = vmatmul.bf16.gmra.mxu0 %v1675
    %v1887 = vpop.f32.mrf.mxu0
    %v1888 = vadd.f32 0.0, %v1887
    %v1889 = vpop.f32.mrf.mxu0
    %v1890 = vadd.f32 0.0, %v1889
    %1891 = vdwg.mxu0
    %1892 = vmatpush.bf16.xpose.msra.mxu0 0
    %1893 = vmatpush.bf16.xpose.msra.mxu0 0
    %1894 = vmatpush.bf16.xpose.msra.mxu0 0
    %1895 = vmatpush.bf16.xpose.msra.mxu0 %v1821
    %1896 = vmatpush.bf16.xpose.msra.mxu0 %v1822
    %1897 = vmatpush.bf16.xpose.msra.mxu0 %v1820
    %1898 = vmatpush.bf16.xpose.msra.mxu0 %v1818
    %1899 = vmatpush.bf16.xpose.msra.mxu0 %v1816
    %1900 = vmatmul.bf16.gmra.mxu0 %v1673
    %v1901 = vpop.f32.mrf.mxu0
    %v1902 = vadd.f32 0.0, %v1901
    %v1903 = vpop.f32.mrf.mxu0
    %v1904 = vadd.f32 0.0, %v1903
    %1905 = vmatmul.bf16.gmra.mxu0 %v1674
    %v1906 = vpop.f32.mrf.mxu0
    %v1907 = vadd.f32 0.0, %v1906
    %v1908 = vpop.f32.mrf.mxu0
    %v1909 = vadd.f32 0.0, %v1908
    %1910 = vmatmul.bf16.gmra.mxu0 %v1675
    %v1911 = vpop.f32.mrf.mxu0
    %v1912 = vadd.f32 0.0, %v1911
    %v1913 = vpop.f32.mrf.mxu0
    %v1914 = vadd.f32 0.0, %v1913
    %1915 = vdwg.mxu0
    %v1916 = vadd.f32 %v1595, %v1854
    %v1917 = vadd.f32 %v1596, %v1878
    %v1918 = vadd.f32 %v1597, %v1902
    %v1919 = vadd.f32 %v1598, %v1856
    %v1920 = vadd.f32 %v1599, %v1880
    %v1921 = vadd.f32 %v1600, %v1904
    %v1922 = vadd.f32 %v1601, %v1859
    %v1923 = vadd.f32 %v1602, %v1883
    %v1924 = vadd.f32 %v1603, %v1907
    %v1925 = vadd.f32 %v1604, %v1861
    %v1926 = vadd.f32 %v1605, %v1885
    %v1927 = vadd.f32 %v1606, %v1909
    %v1928 = vadd.f32 %v1607, %v1864
    %v1929 = vadd.f32 %v1608, %v1888
    %v1930 = vadd.f32 %v1609, %v1912
    %v1931 = vadd.f32 %v1610, %v1866
    %v1932 = vadd.f32 %v1611, %v1890
    %v1933 = vadd.f32 %v1612, %v1914
    %v1934 = vld [vmem:[#allocation2 + $0x10] sm:$0xc]
    %v1935 = vld [vmem:[#allocation2 + $0x14] sm:$0xf]
    %v1936 = vld [vmem:[#allocation2 + $0x18] sm:$0xf]
    %v1937 = vld [vmem:[#allocation2 + $0x1c] sm:$0xf]
    %v1938 = vld [vmem:[#allocation2 + $0x20] sm:$0xf]
    %v1939 = vld [vmem:[#allocation2 + $0x24] sm:$0xf]
    %v1940 = vld [vmem:[#allocation2 + $0x28] sm:$0xf]
    %v1941 = vld [vmem:[#allocation2 + $0x2c] sm:$0xf]
    %v1942 = vld [vmem:[#allocation2 + $0x30] sm:$0xf]
    %v1943 = vld [vmem:[#allocation2 + $0x34] sm:$0xf]
    %v1944 = vld [vmem:[#allocation2 + $0x38] sm:$0xf]
    %v1945 = vld [vmem:[#allocation2 + $0x3c] sm:$0xf]
    %v1946 = vld [vmem:[#allocation2 + $0x40] sm:$0xf]
    %v1947 = vld [vmem:[#allocation2 + $0x44] sm:$0xf]
    %v1948 = vld [vmem:[#allocation2 + $0x48] sm:$0xf]
    %v1949 = vld [vmem:[#allocation2 + $0x4c] sm:$0xf]
    %v1950 = vld [vmem:[#allocation2 + $0x50] sm:$0xf]
    %v1951 = vld [vmem:[#allocation2 + $0x54] sm:$0xf]
    %v1952 = vld [vmem:[#allocation2 + $0x58] sm:$0xf]
    %v1953 = vld [vmem:[#allocation2 + $0x5c] sm:$0xf]
    %v1954 = vld [vmem:[#allocation2 + $0x60] sm:$0xf]
    %v1955 = vld [vmem:[#allocation2 + $0x64] sm:$0xf]
    %v1956 = vld [vmem:[#allocation2 + $0x68] sm:$0xf]
    %v1957 = vld [vmem:[#allocation2 + $0x6c] sm:$0xf]
    %v1958 = vld [vmem:[#allocation2 + $0x70] sm:$0xf]
    %v1959 = vld [vmem:[#allocation2 + $0x74] sm:$0xf]
    %v1960 = vld [vmem:[#allocation2 + $0x78] sm:$0xf]
    %v1961 = vld [vmem:[#allocation2 + $0x7c] sm:$0xf]
    %v1962 = vld [vmem:[#allocation2 + $0x80] sm:$0xf]
    %v1963 = vld [vmem:[#allocation2 + $0x84] sm:$0xf]
    %v1964 = vld [vmem:[#allocation2 + $0x88] sm:$0xf]
    %v1965 = vld [vmem:[#allocation2 + $0x8c] sm:$0xf]
    %v1966 = vld [vmem:[#allocation2 + $0x90] sm:$0xf]
    %v1967 = vld [vmem:[#allocation2 + $0x94] sm:$0xf]
    %v1968 = vld [vmem:[#allocation2 + $0x98] sm:$0xf]
    %v1969 = vld [vmem:[#allocation2 + $0x9c] sm:$0xf]
    %v1970 = vld [vmem:[#allocation2 + $0xa0] sm:$0xf]
    %v1971 = vld [vmem:[#allocation2 + $0xa4] sm:$0xf]
    %v1972 = vld [vmem:[#allocation2 + $0xa8] sm:$0xf]
    %v1973 = vld [vmem:[#allocation2 + $0xac] sm:$0xf]
    %v1974 = vld [vmem:[#allocation2 + $0xb0] sm:$0xf]
    %v1975 = vld [vmem:[#allocation2 + $0xb4] sm:$0x1]
    %s1976 = scalar_lea.vmem [#allocation5], 168
    %v1977 = vld [vmem:[%s1976] sm:$0xf]
    %v1978 = vld [vmem:[%s1976 + $0x4] sm:$0xf]
    %v1979 = vld [vmem:[%s1976 + $0x8] sm:$0xf]
    %v1980 = vld [vmem:[%s1976 + $0xc] sm:$0xf]
    %v1981 = vld [vmem:[%s1976 + $0x10] sm:$0xf]
    %v1982 = vld [vmem:[%s1976 + $0x14] sm:$0xf]
    %v1989 = vunpack.c.l.b16 %v1977
    %v1990 = vunpack.c.l.b16 %v1978
    %v1991 = vunpack.c.l.b16 %v1979
    %v1992 = vunpack.c.l.b16 %v1980
    %v1993 = vunpack.c.l.b16 %v1981
    %v1994 = vunpack.c.l.b16 %v1982
    %v1995 = vpack.c.b16 %v1990, %v1989
    %v1996 = vpack.c.b16 %v1992, %v1991
    %v1997 = vpack.c.b16 %v1994, %v1993
    %v2043 = vunpack.c.l.b16 %v1934
    %v2044 = vunpack.c.l.b16 %v1935
    %v2045 = vunpack.c.l.b16 %v1936
    %v2046 = vunpack.c.l.b16 %v1937
    %v2047 = vunpack.c.l.b16 %v1938
    %v2048 = vunpack.c.l.b16 %v1939
    %v2049 = vunpack.c.l.b16 %v1940
    %v2050 = vunpack.c.l.b16 %v1941
    %v2051 = vunpack.c.l.b16 %v1942
    %v2052 = vunpack.c.l.b16 %v1943
    %v2053 = vunpack.c.l.b16 %v1944
    %v2054 = vunpack.c.l.b16 %v1945
    %v2055 = vunpack.c.l.b16 %v1946
    %v2056 = vunpack.c.l.b16 %v1947
    %v2057 = vunpack.c.l.b16 %v1948
    %v2058 = vunpack.c.l.b16 %v1949
    %v2059 = vunpack.c.l.b16 %v1950
    %v2060 = vunpack.c.l.b16 %v1951
    %v2061 = vunpack.c.l.b16 %v1952
    %v2062 = vunpack.c.l.b16 %v1953
    %v2063 = vunpack.c.l.b16 %v1954
    %v2064 = vunpack.c.l.b16 %v1955
    %v2065 = vunpack.c.l.b16 %v1956
    %v2066 = vunpack.c.l.b16 %v1957
    %v2067 = vunpack.c.l.b16 %v1958
    %v2068 = vunpack.c.l.b16 %v1959
    %v2069 = vunpack.c.l.b16 %v1960
    %v2070 = vunpack.c.l.b16 %v1961
    %v2071 = vunpack.c.l.b16 %v1962
    %v2072 = vunpack.c.l.b16 %v1963
    %v2073 = vunpack.c.l.b16 %v1964
    %v2074 = vunpack.c.l.b16 %v1965
    %v2075 = vunpack.c.l.b16 %v1966
    %v2076 = vunpack.c.l.b16 %v1967
    %v2077 = vunpack.c.l.b16 %v1968
    %v2078 = vunpack.c.l.b16 %v1969
    %v2079 = vunpack.c.l.b16 %v1970
    %v2080 = vunpack.c.l.b16 %v1971
    %v2081 = vunpack.c.l.b16 %v1972
    %v2082 = vunpack.c.l.b16 %v1973
    %v2083 = vunpack.c.l.b16 %v1974
    %v2084 = vunpack.c.l.b16 %v1975
    %v2085 = vpack.c.b16 %v2044, %v2043
    %v2086 = vpack.c.b16 %v2046, %v2045
    %v2087 = vpack.c.b16 %v2048, %v2047
    %v2088 = vpack.c.b16 %v2050, %v2049
    %v2089 = vpack.c.b16 %v2052, %v2051
    %v2090 = vpack.c.b16 %v2054, %v2053
    %v2091 = vpack.c.b16 %v2056, %v2055
    %v2092 = vpack.c.b16 %v2058, %v2057
    %v2093 = vpack.c.b16 %v2060, %v2059
    %v2094 = vpack.c.b16 %v2062, %v2061
    %v2095 = vpack.c.b16 %v2064, %v2063
    %v2096 = vpack.c.b16 %v2066, %v2065
    %v2097 = vpack.c.b16 %v2068, %v2067
    %v2098 = vpack.c.b16 %v2070, %v2069
    %v2099 = vpack.c.b16 %v2072, %v2071
    %v2100 = vpack.c.b16 %v2074, %v2073
    %v2101 = vpack.c.b16 %v2076, %v2075
    %v2102 = vpack.c.b16 %v2078, %v2077
    %v2103 = vpack.c.b16 %v2080, %v2079
    %v2104 = vpack.c.b16 %v2082, %v2081
    %v2105 = vpack.c.b16 %v2084, %v2083
    %vm2106 = vsmask.f32 5376
    %v2108 = vshrl.u32 %v2085, 16
    %v2110 = vrot.slane %v2108, 2
    %v2111 = vshll.u32 %v2085, 16
    %v2113 = vrot.slane %v2111, 3
    %v2114 = vor.u32 %v2110, %v2113
    %v2116 = vshrl.u32 %v2086, 16
    %v2118 = vrot.slane %v2116, 2
    %v2119 = vshll.u32 %v2086, 16
    %v2121 = vrot.slane %v2119, 3
    %v2122 = vor.u32 %v2118, %v2121
    %v2123 = vsel %vm2106, %v2114, %v2122
    %v2125 = vshrl.u32 %v2087, 16
    %v2127 = vrot.slane %v2125, 2
    %v2128 = vshll.u32 %v2087, 16
    %v2130 = vrot.slane %v2128, 3
    %v2131 = vor.u32 %v2127, %v2130
    %v2132 = vsel %vm2106, %v2122, %v2131
    %v2134 = vshrl.u32 %v2088, 16
    %v2136 = vrot.slane %v2134, 2
    %v2137 = vshll.u32 %v2088, 16
    %v2139 = vrot.slane %v2137, 3
    %v2140 = vor.u32 %v2136, %v2139
    %v2141 = vsel %vm2106, %v2131, %v2140
    %v2143 = vshrl.u32 %v2089, 16
    %v2145 = vrot.slane %v2143, 2
    %v2146 = vshll.u32 %v2089, 16
    %v2148 = vrot.slane %v2146, 3
    %v2149 = vor.u32 %v2145, %v2148
    %v2150 = vsel %vm2106, %v2140, %v2149
    %v2152 = vshrl.u32 %v2090, 16
    %v2154 = vrot.slane %v2152, 2
    %v2155 = vshll.u32 %v2090, 16
    %v2157 = vrot.slane %v2155, 3
    %v2158 = vor.u32 %v2154, %v2157
    %v2159 = vsel %vm2106, %v2149, %v2158
    %v2161 = vshrl.u32 %v2091, 16
    %v2163 = vrot.slane %v2161, 2
    %v2164 = vshll.u32 %v2091, 16
    %v2166 = vrot.slane %v2164, 3
    %v2167 = vor.u32 %v2163, %v2166
    %v2168 = vsel %vm2106, %v2158, %v2167
    %v2170 = vshrl.u32 %v2092, 16
    %v2172 = vrot.slane %v2170, 2
    %v2173 = vshll.u32 %v2092, 16
    %v2175 = vrot.slane %v2173, 3
    %v2176 = vor.u32 %v2172, %v2175
    %v2177 = vsel %vm2106, %v2167, %v2176
    %v2179 = vshrl.u32 %v2093, 16
    %v2181 = vrot.slane %v2179, 2
    %v2182 = vshll.u32 %v2093, 16
    %v2184 = vrot.slane %v2182, 3
    %v2185 = vor.u32 %v2181, %v2184
    %v2186 = vsel %vm2106, %v2176, %v2185
    %v2188 = vshrl.u32 %v2094, 16
    %v2190 = vrot.slane %v2188, 2
    %v2191 = vshll.u32 %v2094, 16
    %v2193 = vrot.slane %v2191, 3
    %v2194 = vor.u32 %v2190, %v2193
    %v2195 = vsel %vm2106, %v2185, %v2194
    %v2197 = vshrl.u32 %v2095, 16
    %v2199 = vrot.slane %v2197, 2
    %v2200 = vshll.u32 %v2095, 16
    %v2202 = vrot.slane %v2200, 3
    %v2203 = vor.u32 %v2199, %v2202
    %v2204 = vsel %vm2106, %v2194, %v2203
    %v2206 = vshrl.u32 %v2096, 16
    %v2208 = vrot.slane %v2206, 2
    %v2209 = vshll.u32 %v2096, 16
    %v2211 = vrot.slane %v2209, 3
    %v2212 = vor.u32 %v2208, %v2211
    %v2213 = vsel %vm2106, %v2203, %v2212
    %v2215 = vshrl.u32 %v2097, 16
    %v2217 = vrot.slane %v2215, 2
    %v2218 = vshll.u32 %v2097, 16
    %v2220 = vrot.slane %v2218, 3
    %v2221 = vor.u32 %v2217, %v2220
    %v2222 = vsel %vm2106, %v2212, %v2221
    %v2224 = vshrl.u32 %v2098, 16
    %v2226 = vrot.slane %v2224, 2
    %v2227 = vshll.u32 %v2098, 16
    %v2229 = vrot.slane %v2227, 3
    %v2230 = vor.u32 %v2226, %v2229
    %v2231 = vsel %vm2106, %v2221, %v2230
    %v2233 = vshrl.u32 %v2099, 16
    %v2235 = vrot.slane %v2233, 2
    %v2236 = vshll.u32 %v2099, 16
    %v2238 = vrot.slane %v2236, 3
    %v2239 = vor.u32 %v2235, %v2238
    %v2240 = vsel %vm2106, %v2230, %v2239
    %v2242 = vshrl.u32 %v2100, 16
    %v2244 = vrot.slane %v2242, 2
    %v2245 = vshll.u32 %v2100, 16
    %v2247 = vrot.slane %v2245, 3
    %v2248 = vor.u32 %v2244, %v2247
    %v2249 = vsel %vm2106, %v2239, %v2248
    %v2251 = vshrl.u32 %v2101, 16
    %v2253 = vrot.slane %v2251, 2
    %v2254 = vshll.u32 %v2101, 16
    %v2256 = vrot.slane %v2254, 3
    %v2257 = vor.u32 %v2253, %v2256
    %v2258 = vsel %vm2106, %v2248, %v2257
    %v2260 = vshrl.u32 %v2102, 16
    %v2262 = vrot.slane %v2260, 2
    %v2263 = vshll.u32 %v2102, 16
    %v2265 = vrot.slane %v2263, 3
    %v2266 = vor.u32 %v2262, %v2265
    %v2267 = vsel %vm2106, %v2257, %v2266
    %v2269 = vshrl.u32 %v2103, 16
    %v2271 = vrot.slane %v2269, 2
    %v2272 = vshll.u32 %v2103, 16
    %v2274 = vrot.slane %v2272, 3
    %v2275 = vor.u32 %v2271, %v2274
    %v2276 = vsel %vm2106, %v2266, %v2275
    %v2278 = vshrl.u32 %v2104, 16
    %v2280 = vrot.slane %v2278, 2
    %v2281 = vshll.u32 %v2104, 16
    %v2283 = vrot.slane %v2281, 3
    %v2284 = vor.u32 %v2280, %v2283
    %v2285 = vsel %vm2106, %v2275, %v2284
    %v2287 = vshrl.u32 %v2105, 16
    %v2289 = vrot.slane %v2287, 2
    %v2290 = vshll.u32 %v2105, 16
    %v2292 = vrot.slane %v2290, 3
    %v2293 = vor.u32 %v2289, %v2292
    %v2294 = vsel %vm2106, %v2284, %v2293
    %2316 = vmatpush.bf16.xpose.msra.mxu0 %v2186
    %2317 = vmatpush.bf16.xpose.msra.mxu0 %v2177
    %2318 = vmatpush.bf16.xpose.msra.mxu0 %v2168
    %2319 = vmatpush.bf16.xpose.msra.mxu0 %v2159
    %2320 = vmatpush.bf16.xpose.msra.mxu0 %v2150
    %2321 = vmatpush.bf16.xpose.msra.mxu0 %v2141
    %2322 = vmatpush.bf16.xpose.msra.mxu0 %v2132
    %2323 = vmatpush.bf16.xpose.msra.mxu0 %v2123
    %2324 = vmatmul.bf16.gmra.mxu0 %v1995
    %v2325 = vpop.f32.mrf.mxu0
    %v2326 = vadd.f32 0.0, %v2325
    %v2327 = vpop.f32.mrf.mxu0
    %v2328 = vadd.f32 0.0, %v2327
    %2329 = vmatmul.bf16.gmra.mxu0 %v1996
    %v2330 = vpop.f32.mrf.mxu0
    %v2331 = vadd.f32 0.0, %v2330
    %v2332 = vpop.f32.mrf.mxu0
    %v2333 = vadd.f32 0.0, %v2332
    %2334 = vmatmul.bf16.gmra.mxu0 %v1997
    %v2335 = vpop.f32.mrf.mxu0
    %v2336 = vadd.f32 0.0, %v2335
    %v2337 = vpop.f32.mrf.mxu0
    %v2338 = vadd.f32 0.0, %v2337
    %2339 = vdwg.mxu0
    %2340 = vmatpush.bf16.xpose.msra.mxu0 %v2258
    %2341 = vmatpush.bf16.xpose.msra.mxu0 %v2249
    %2342 = vmatpush.bf16.xpose.msra.mxu0 %v2240
    %2343 = vmatpush.bf16.xpose.msra.mxu0 %v2231
    %2344 = vmatpush.bf16.xpose.msra.mxu0 %v2222
    %2345 = vmatpush.bf16.xpose.msra.mxu0 %v2213
    %2346 = vmatpush.bf16.xpose.msra.mxu0 %v2204
    %2347 = vmatpush.bf16.xpose.msra.mxu0 %v2195
    %2348 = vmatmul.bf16.gmra.mxu0 %v1995
    %v2349 = vpop.f32.mrf.mxu0
    %v2350 = vadd.f32 0.0, %v2349
    %v2351 = vpop.f32.mrf.mxu0
    %v2352 = vadd.f32 0.0, %v2351
    %2353 = vmatmul.bf16.gmra.mxu0 %v1996
    %v2354 = vpop.f32.mrf.mxu0
    %v2355 = vadd.f32 0.0, %v2354
    %v2356 = vpop.f32.mrf.mxu0
    %v2357 = vadd.f32 0.0, %v2356
    %2358 = vmatmul.bf16.gmra.mxu0 %v1997
    %v2359 = vpop.f32.mrf.mxu0
    %v2360 = vadd.f32 0.0, %v2359
    %v2361 = vpop.f32.mrf.mxu0
    %v2362 = vadd.f32 0.0, %v2361
    %2363 = vdwg.mxu0
    %2364 = vmatpush.bf16.xpose.msra.mxu0 0
    %2365 = vmatpush.bf16.xpose.msra.mxu0 0
    %2366 = vmatpush.bf16.xpose.msra.mxu0 0
    %2367 = vmatpush.bf16.xpose.msra.mxu0 %v2293
    %2368 = vmatpush.bf16.xpose.msra.mxu0 %v2294
    %2369 = vmatpush.bf16.xpose.msra.mxu0 %v2285
    %2370 = vmatpush.bf16.xpose.msra.mxu0 %v2276
    %2371 = vmatpush.bf16.xpose.msra.mxu0 %v2267
    %2372 = vmatmul.bf16.gmra.mxu0 %v1995
    %v2373 = vpop.f32.mrf.mxu0
    %v2374 = vadd.f32 0.0, %v2373
    %v2375 = vpop.f32.mrf.mxu0
    %v2376 = vadd.f32 0.0, %v2375
    %2377 = vmatmul.bf16.gmra.mxu0 %v1996
    %v2378 = vpop.f32.mrf.mxu0
    %v2379 = vadd.f32 0.0, %v2378
    %v2380 = vpop.f32.mrf.mxu0
    %v2381 = vadd.f32 0.0, %v2380
    %2382 = vmatmul.bf16.gmra.mxu0 %v1997
    %v2383 = vpop.f32.mrf.mxu0
    %v2384 = vadd.f32 0.0, %v2383
    %v2385 = vpop.f32.mrf.mxu0
    %v2386 = vadd.f32 0.0, %v2385
    %2387 = vdwg.mxu0
    %v2388 = vadd.f32 %v1916, %v2326
    %v2389 = vadd.f32 %v1917, %v2350
    %v2390 = vadd.f32 %v1918, %v2374
    %v2391 = vadd.f32 %v1919, %v2328
    %v2392 = vadd.f32 %v1920, %v2352
    %v2393 = vadd.f32 %v1921, %v2376
    %v2394 = vadd.f32 %v1922, %v2331
    %v2395 = vadd.f32 %v1923, %v2355
    %v2396 = vadd.f32 %v1924, %v2379
    %v2397 = vadd.f32 %v1925, %v2333
    %v2398 = vadd.f32 %v1926, %v2357
    %v2399 = vadd.f32 %v1927, %v2381
    %v2400 = vadd.f32 %v1928, %v2336
    %v2401 = vadd.f32 %v1929, %v2360
    %v2402 = vadd.f32 %v1930, %v2384
    %v2403 = vadd.f32 %v1931, %v2338
    %v2404 = vadd.f32 %v1932, %v2362
    %v2405 = vadd.f32 %v1933, %v2386
    %v2406 = vld [vmem:[#allocation2 + $0x10] sm:$0x8]
    %s2407 = scalar_lea.vmem [#allocation5], 192
    %v2408 = vld [vmem:[%s2407] sm:$0xf]
    %v2409 = vld [vmem:[%s2407 + $0x4] sm:$0xf]
    %v2410 = vld [vmem:[%s2407 + $0x8] sm:$0xf]
    %v2411 = vld [vmem:[%s2407 + $0xc] sm:$0xf]
    %v2412 = vld [vmem:[%s2407 + $0x10] sm:$0xf]
    %v2413 = vld [vmem:[%s2407 + $0x14] sm:$0xf]
    %v2420 = vunpack.c.l.b16 %v2408
    %v2421 = vunpack.c.l.b16 %v2409
    %v2422 = vunpack.c.l.b16 %v2410
    %v2423 = vunpack.c.l.b16 %v2411
    %v2424 = vunpack.c.l.b16 %v2412
    %v2425 = vunpack.c.l.b16 %v2413
    %v2426 = vpack.c.b16 %v2421, %v2420
    %v2427 = vpack.c.b16 %v2423, %v2422
    %v2428 = vpack.c.b16 %v2425, %v2424
    %v2433 = vunpack.c.l.b16 %v2406
    %v2434 = vpack.c.b16 %v2044, %v2433
    %vm2435 = vcmask 1044480
    %v2436 = vrot.slane %v2434, 3
    %v2437 = vrot.slane %v2086, 3
    %v2438 = vsel %vm2435, %v2436, %v2437
    %v2439 = vrot.slane %v2087, 3
    %v2440 = vsel %vm2435, %v2437, %v2439
    %v2441 = vrot.slane %v2088, 3
    %v2442 = vsel %vm2435, %v2439, %v2441
    %v2443 = vrot.slane %v2089, 3
    %v2444 = vsel %vm2435, %v2441, %v2443
    %v2445 = vrot.slane %v2090, 3
    %v2446 = vsel %vm2435, %v2443, %v2445
    %v2447 = vrot.slane %v2091, 3
    %v2448 = vsel %vm2435, %v2445, %v2447
    %v2449 = vrot.slane %v2092, 3
    %v2450 = vsel %vm2435, %v2447, %v2449
    %v2451 = vrot.slane %v2093, 3
    %v2452 = vsel %vm2435, %v2449, %v2451
    %v2453 = vrot.slane %v2094, 3
    %v2454 = vsel %vm2435, %v2451, %v2453
    %v2455 = vrot.slane %v2095, 3
    %v2456 = vsel %vm2435, %v2453, %v2455
    %v2457 = vrot.slane %v2096, 3
    %v2458 = vsel %vm2435, %v2455, %v2457
    %v2459 = vrot.slane %v2097, 3
    %v2460 = vsel %vm2435, %v2457, %v2459
    %v2461 = vrot.slane %v2098, 3
    %v2462 = vsel %vm2435, %v2459, %v2461
    %v2463 = vrot.slane %v2099, 3
    %v2464 = vsel %vm2435, %v2461, %v2463
    %v2465 = vrot.slane %v2100, 3
    %v2466 = vsel %vm2435, %v2463, %v2465
    %v2467 = vrot.slane %v2101, 3
    %v2468 = vsel %vm2435, %v2465, %v2467
    %v2469 = vrot.slane %v2102, 3
    %v2470 = vsel %vm2435, %v2467, %v2469
    %v2471 = vrot.slane %v2103, 3
    %v2472 = vsel %vm2435, %v2469, %v2471
    %v2473 = vrot.slane %v2104, 3
    %v2474 = vsel %vm2435, %v2471, %v2473
    %v2475 = vrot.slane %v2105, 3
    %v2476 = vsel %vm2435, %v2473, %v2475
    %2498 = vmatpush.bf16.xpose.msra.mxu0 %v2452
    %2499 = vmatpush.bf16.xpose.msra.mxu0 %v2450
    %2500 = vmatpush.bf16.xpose.msra.mxu0 %v2448
    %2501 = vmatpush.bf16.xpose.msra.mxu0 %v2446
    %2502 = vmatpush.bf16.xpose.msra.mxu0 %v2444
    %2503 = vmatpush.bf16.xpose.msra.mxu0 %v2442
    %2504 = vmatpush.bf16.xpose.msra.mxu0 %v2440
    %2505 = vmatpush.bf16.xpose.msra.mxu0 %v2438
    %2506 = vmatmul.bf16.gmra.mxu0 %v2426
    %v2507 = vpop.f32.mrf.mxu0
    %v2508 = vadd.f32 0.0, %v2507
    %v2509 = vpop.f32.mrf.mxu0
    %v2510 = vadd.f32 0.0, %v2509
    %2511 = vmatmul.bf16.gmra.mxu0 %v2427
    %v2512 = vpop.f32.mrf.mxu0
    %v2513 = vadd.f32 0.0, %v2512
    %v2514 = vpop.f32.mrf.mxu0
    %v2515 = vadd.f32 0.0, %v2514
    %2516 = vmatmul.bf16.gmra.mxu0 %v2428
    %v2517 = vpop.f32.mrf.mxu0
    %v2518 = vadd.f32 0.0, %v2517
    %v2519 = vpop.f32.mrf.mxu0
    %v2520 = vadd.f32 0.0, %v2519
    %2521 = vdwg.mxu0
    %2522 = vmatpush.bf16.xpose.msra.mxu0 %v2468
    %2523 = vmatpush.bf16.xpose.msra.mxu0 %v2466
    %2524 = vmatpush.bf16.xpose.msra.mxu0 %v2464
    %2525 = vmatpush.bf16.xpose.msra.mxu0 %v2462
    %2526 = vmatpush.bf16.xpose.msra.mxu0 %v2460
    %2527 = vmatpush.bf16.xpose.msra.mxu0 %v2458
    %2528 = vmatpush.bf16.xpose.msra.mxu0 %v2456
    %2529 = vmatpush.bf16.xpose.msra.mxu0 %v2454
    %2530 = vmatmul.bf16.gmra.mxu0 %v2426
    %v2531 = vpop.f32.mrf.mxu0
    %v2532 = vadd.f32 0.0, %v2531
    %v2533 = vpop.f32.mrf.mxu0
    %v2534 = vadd.f32 0.0, %v2533
    %2535 = vmatmul.bf16.gmra.mxu0 %v2427
    %v2536 = vpop.f32.mrf.mxu0
    %v2537 = vadd.f32 0.0, %v2536
    %v2538 = vpop.f32.mrf.mxu0
    %v2539 = vadd.f32 0.0, %v2538
    %2540 = vmatmul.bf16.gmra.mxu0 %v2428
    %v2541 = vpop.f32.mrf.mxu0
    %v2542 = vadd.f32 0.0, %v2541
    %v2543 = vpop.f32.mrf.mxu0
    %v2544 = vadd.f32 0.0, %v2543
    %2545 = vdwg.mxu0
    %2546 = vmatpush.bf16.xpose.msra.mxu0 0
    %2547 = vmatpush.bf16.xpose.msra.mxu0 0
    %2548 = vmatpush.bf16.xpose.msra.mxu0 0
    %2549 = vmatpush.bf16.xpose.msra.mxu0 %v2475
    %2550 = vmatpush.bf16.xpose.msra.mxu0 %v2476
    %2551 = vmatpush.bf16.xpose.msra.mxu0 %v2474
    %2552 = vmatpush.bf16.xpose.msra.mxu0 %v2472
    %2553 = vmatpush.bf16.xpose.msra.mxu0 %v2470
    %2554 = vmatmul.bf16.gmra.mxu0 %v2426
    %v2555 = vpop.f32.mrf.mxu0
    %v2556 = vadd.f32 0.0, %v2555
    %v2557 = vpop.f32.mrf.mxu0
    %v2558 = vadd.f32 0.0, %v2557
    %2559 = vmatmul.bf16.gmra.mxu0 %v2427
    %v2560 = vpop.f32.mrf.mxu0
    %v2561 = vadd.f32 0.0, %v2560
    %v2562 = vpop.f32.mrf.mxu0
    %v2563 = vadd.f32 0.0, %v2562
    %2564 = vmatmul.bf16.gmra.mxu0 %v2428
    %v2565 = vpop.f32.mrf.mxu0
    %v2566 = vadd.f32 0.0, %v2565
    %v2567 = vpop.f32.mrf.mxu0
    %v2568 = vadd.f32 0.0, %v2567
    %2569 = vdwg.mxu0
    %v2570 = vadd.f32 %v2388, %v2508
    %v2571 = vadd.f32 %v2389, %v2532
    %v2572 = vadd.f32 %v2390, %v2556
    %v2573 = vadd.f32 %v2391, %v2510
    %v2574 = vadd.f32 %v2392, %v2534
    %v2575 = vadd.f32 %v2393, %v2558
    %v2576 = vadd.f32 %v2394, %v2513
    %v2577 = vadd.f32 %v2395, %v2537
    %v2578 = vadd.f32 %v2396, %v2561
    %v2579 = vadd.f32 %v2397, %v2515
    %v2580 = vadd.f32 %v2398, %v2539
    %v2581 = vadd.f32 %v2399, %v2563
    %v2582 = vadd.f32 %v2400, %v2518
    %v2583 = vadd.f32 %v2401, %v2542
    %v2584 = vadd.f32 %v2402, %v2566
    %v2585 = vadd.f32 %v2403, %v2520
    %v2586 = vadd.f32 %v2404, %v2544
    %v2587 = vadd.f32 %v2405, %v2568
    %v2588 = vld [vmem:[%s2] sm:$0xff]
    %v2589 = vld [vmem:[%s2 + $0x8] sm:$0xff]
    %v2590 = vld [vmem:[%s2 + $0x10] sm:$0xff]
    %v2591 = vld [vmem:[%s2 + $0x18] sm:$0xff]
    %v2592 = vld [vmem:[%s2 + $0x20] sm:$0xff]
    %v2593 = vld [vmem:[%s2 + $0x28] sm:$0xff]
    %2595 = vset.pattern.permute.xlu0 0
    %2596 = vperm.xlu0 %2595, %v2588
    %v2597 = vpop.permute.xlu0 %2596
    %2600 = vset.pattern.permute.xlu0 0
    %2601 = vperm.xlu0 %2600, %v2589
    %v2602 = vpop.permute.xlu0 %2601
    %2605 = vset.pattern.permute.xlu0 0
    %2606 = vperm.xlu0 %2605, %v2590
    %v2607 = vpop.permute.xlu0 %2606
    %2610 = vset.pattern.permute.xlu0 0
    %2611 = vperm.xlu0 %2610, %v2591
    %v2612 = vpop.permute.xlu0 %2611
    %2615 = vset.pattern.permute.xlu0 0
    %2616 = vperm.xlu0 %2615, %v2592
    %v2617 = vpop.permute.xlu0 %2616
    %2620 = vset.pattern.permute.xlu0 0
    %2621 = vperm.xlu0 %2620, %v2593
    %v2622 = vpop.permute.xlu0 %2621
    %v2624 = vadd.f32 %v2570, %v2597
    %v2625 = vadd.f32 %v2571, %v2597
    %v2626 = vadd.f32 %v2572, %v2597
    %v2627 = vadd.f32 %v2573, %v2602
    %v2628 = vadd.f32 %v2574, %v2602
    %v2629 = vadd.f32 %v2575, %v2602
    %v2630 = vadd.f32 %v2576, %v2607
    %v2631 = vadd.f32 %v2577, %v2607
    %v2632 = vadd.f32 %v2578, %v2607
    %v2633 = vadd.f32 %v2579, %v2612
    %v2634 = vadd.f32 %v2580, %v2612
    %v2635 = vadd.f32 %v2581, %v2612
    %v2636 = vadd.f32 %v2582, %v2617
    %v2637 = vadd.f32 %v2583, %v2617
    %v2638 = vadd.f32 %v2584, %v2617
    %v2639 = vadd.f32 %v2585, %v2622
    %v2640 = vadd.f32 %v2586, %v2622
    %v2641 = vadd.f32 %v2587, %v2622
    %2642 = vst [vmem:[#allocation7] sm:$0xff] %v2624
    %2643 = vst [vmem:[#allocation7 + $0x8] sm:$0xff] %v2625
    %vm2644 = vcmask 556032
    %2645 = vst.msk [vmem:[#allocation7 + $0x10] sm:$0xff] %vm2644, %v2626
    %2646 = vst [vmem:[#allocation7 + $0x18] sm:$0xff] %v2627
    %2647 = vst [vmem:[#allocation7 + $0x20] sm:$0xff] %v2628
    %2648 = vst.msk [vmem:[#allocation7 + $0x28] sm:$0xff] %vm2644, %v2629
    %2649 = vst [vmem:[#allocation7 + $0x30] sm:$0xff] %v2630
    %2650 = vst [vmem:[#allocation7 + $0x38] sm:$0xff] %v2631
    %2651 = vst.msk [vmem:[#allocation7 + $0x40] sm:$0xff] %vm2644, %v2632
    %2652 = vst [vmem:[#allocation7 + $0x48] sm:$0xff] %v2633
    %2653 = vst [vmem:[#allocation7 + $0x50] sm:$0xff] %v2634
    %2654 = vst.msk [vmem:[#allocation7 + $0x58] sm:$0xff] %vm2644, %v2635
    %2655 = vst [vmem:[#allocation7 + $0x60] sm:$0xff] %v2636
    %2656 = vst [vmem:[#allocation7 + $0x68] sm:$0xff] %v2637
    %2657 = vst.msk [vmem:[#allocation7 + $0x70] sm:$0xff] %vm2644, %v2638
    %2658 = vst [vmem:[#allocation7 + $0x78] sm:$0xff] %v2639
    %2659 = vst [vmem:[#allocation7 + $0x80] sm:$0xff] %v2640
    %2660 = vst.msk [vmem:[#allocation7 + $0x88] sm:$0xff] %vm2644, %v2641
    // Predicated region
    $region22: #{tpu_custom_call.1} parent=1 // pred_check
      _
    $region23: #{tpu_custom_call.1} parent=1 // pred_check_branch
      %2662 = sbr.rel (0) target = $region25
    $region24: #{tpu_custom_call.1} parent=1 // pred_region
      %2664 = vsyncadd [#allocation4], 0
      %s2665 = sshll.u32 [#allocation7], 4
      %s2666 = int_to_ptr.vmem [resolvable:$true] %s2665
      %s2667 = sshll.u32 %s3, 4
      %s2668 = int_to_ptr.hbm [resolvable:$true] %s2667
      %2673 = dma.vmem_to_hbm [thread:$0]  %s2666, 2304, %s2668, [#allocation4], 384, 384, 24
    $region25: #{tpu_custom_call.1} parent=1 // pred_fallthru
      _
    // Predicated region
    $region26: #{tpu_custom_call.1} parent=1 // pred_check
      _
    $region27: #{tpu_custom_call.1} parent=1 // pred_check_branch
      %2675 = sbr.rel (0) target = $region29
    $region28: #{tpu_custom_call.1} parent=1 // pred_region
      %2677 = dma.done [#allocation4], 2304
    $region29: #{tpu_custom_call.1} parent=1 // pred_fallthru
      _
    %2678 = vsyncpa [#allocation3], 1
    %2679 = vsyncpa [#allocation6], 1
    %2680 = vsyncpa [#allocation4], 1

</llo_original>
